<compile_context>
chip_gen: v6e
topology: v6e:2x2x1
jax: 0.10.0
libtpu: 0.0.40
codegen_flags: <defaults>
</compile_context>

<pallas_src>
import functools

import jax
import jax.numpy as jnp
from jax import lax
from jax.experimental import pallas as pl
from jax.experimental.pallas import tpu as pltpu


def _sigmoid(z):
    # sigmoid(z) == 0.5 * (1 + tanh(z/2)); single EUP op (tanh) instead of
    # exp + reciprocal. Exact up to float rounding.
    return 0.5 * (1.0 + jnp.tanh(0.5 * z))


def _lstm_recurrence_kernel(x_ref, wih_ref, whh_ref, b_ref, hs_ref,
                            h_scr, c_scr, *, hidden_size, t_blk):
    """One grid step == one block of T_BLK LSTM time steps (axis is 'arbitrary').

    x_ref   : (B, T_BLK, F)  input block (batch-first, no wrapper transpose)
    wih_ref : (F, 4H)        input->gates weights (pre-transposed)
    whh_ref : (H, 4H)        hidden->gates weights (pre-transposed)
    b_ref   : (1, 4H)        b_ih + b_hh
    hs_ref  : (B, T_BLK, H)  per-step hidden states (lane-dense output)
    h_scr/c_scr : (B, H)     recurrent state, persists across grid steps
    """
    tb = pl.program_id(0)

    @pl.when(tb == 0)
    def _():
        # PyTorch: hidden_state=None -> zeros
        h_scr[...] = jnp.zeros_like(h_scr)
        c_scr[...] = jnp.zeros_like(c_scr)

    H = hidden_size
    B = x_ref.shape[0]
    F = x_ref.shape[2]

    # Hoisted input projection: ONE MXU matmul for the whole time block
    # ((B*T_BLK, F) @ (F, 4H)) instead of one tiny matmul per step.
    x2d = x_ref[...].reshape(B * t_blk, F)
    gates_in = (jnp.dot(x2d, wih_ref[...], preferred_element_type=jnp.float32)
                + b_ref[...])                       # (B*T_BLK, 4H)
    gates_in = gates_in.reshape(B, t_blk, 4 * H)    # per-step view, batch-first

    whh = whh_ref[...]                              # (H, 4H), loaded once
    h = h_scr[...]
    c = c_scr[...]

    # Sequential recurrence: only h_prev @ W_hh + gate math per step.
    # Static Python unroll (t_blk is small / a compile-time constant).
    for s in range(t_blk):
        gates = gates_in[:, s, :] + jnp.dot(h, whh,
                                            preferred_element_type=jnp.float32)
        # PyTorch nn.LSTM gate ordering: i, f, g, o.
        # (At production H=512 these 4H-lane slices are 128-aligned.)
        i_g = _sigmoid(gates[:, 0 * H:1 * H])
        f_g = _sigmoid(gates[:, 1 * H:2 * H])
        g_g = jnp.tanh(gates[:, 2 * H:3 * H])
        o_g = _sigmoid(gates[:, 3 * H:4 * H])

        c = f_g * c + i_g * g_g
        h = o_g * jnp.tanh(c)
        hs_ref[:, s, :] = h.astype(hs_ref.dtype)

    h_scr[...] = h
    c_scr[...] = c


def _linear_kernel(h_ref, w_ref, b_ref, o_ref):
    """Output projection as one batched matmul: (M, H) @ (H, O) + b."""
    o_ref[...] = (jnp.dot(h_ref[...], w_ref[...],
                          preferred_element_type=jnp.float32)
                  + b_ref[...]).astype(o_ref.dtype)


def lstm_head_forward(x, params, *, t_blk=128):
    """PhaseModel.forward with opts.only_temporal: returns [out].

    x : (B, T, F) float32  (batch_first, like nn.LSTM(batch_first=True))
    params: dict with PyTorch-layout tensors:
        w_ih (4H, F), w_hh (4H, H), b_ih (4H,), b_hh (4H,),
        w_out (O, H), b_out (O,)
    """
    B, T, F = x.shape
    H = params["w_hh"].shape[1]
    O = params["w_out"].shape[0]

    # Glue: transpose weights once so kernels do plain row-major matmuls.
    w_ih_t = jnp.asarray(params["w_ih"], jnp.float32).T          # (F, 4H)
    w_hh_t = jnp.asarray(params["w_hh"], jnp.float32).T          # (H, 4H)
    b_comb = (jnp.asarray(params["b_ih"], jnp.float32)
              + jnp.asarray(params["b_hh"], jnp.float32))[None]  # (1, 4H)
    w_out_t = jnp.asarray(params["w_out"], jnp.float32).T        # (H, O)
    b_out = jnp.asarray(params["b_out"], jnp.float32)[None]      # (1, O)

    x = x.astype(jnp.float32)                                    # stays batch-first

    # Time blocking: grid iterates over blocks of t_blk steps.
    t_blk = min(t_blk, T)
    t_pad = int(pl.cdiv(T, t_blk)) * t_blk
    if t_pad != T:
        # Zero-padded tail steps only affect state beyond the returned range.
        x = jnp.pad(x, ((0, 0), (0, t_pad - T), (0, 0)))
    n_blocks = t_pad // t_blk

    # Kernel 1: recurrence, emits lane-dense hidden states (B, T, H).
    hs = pl.pallas_call(
        functools.partial(_lstm_recurrence_kernel, hidden_size=H, t_blk=t_blk),
        out_shape=jax.ShapeDtypeStruct((B, t_pad, H), jnp.float32),
        grid_spec=pltpu.PrefetchScalarGridSpec(
            num_scalar_prefetch=0,
            grid=(n_blocks,),
            in_specs=[
                pl.BlockSpec((B, t_blk, F), lambda t: (0, t, 0)),  # x block
                pl.BlockSpec((F, 4 * H), lambda t: (0, 0)),        # W_ih^T (invariant)
                pl.BlockSpec((H, 4 * H), lambda t: (0, 0)),        # W_hh^T (invariant)
                pl.BlockSpec((1, 4 * H), lambda t: (0, 0)),        # bias   (invariant)
            ],
            out_specs=pl.BlockSpec((B, t_blk, H), lambda t: (0, t, 0)),
            scratch_shapes=[
                pltpu.VMEM((B, H), jnp.float32),   # h state (f32, persists)
                pltpu.VMEM((B, H), jnp.float32),   # c state (f32, persists)
            ],
        ),
        compiler_params=pltpu.CompilerParams(
            dimension_semantics=("arbitrary",),    # recurrence over time
        ),
    )(x, w_ih_t, w_hh_t, b_comb)

    # Kernel 2: output Linear as one batched matmul over all (B*T) rows.
    # (B, T, H) -> (B*T, H) is a metadata-only row-major reshape.
    M = B * t_pad
    hs2d = hs.reshape(M, H)
    out2d = pl.pallas_call(
        _linear_kernel,
        out_shape=jax.ShapeDtypeStruct((M, O), jnp.float32),
        grid_spec=pltpu.PrefetchScalarGridSpec(
            num_scalar_prefetch=0,
            grid=(1,),   # tiny at test/inference sizes; block rows for huge T
            in_specs=[
                pl.BlockSpec((M, H), lambda i: (0, 0)),
                pl.BlockSpec((H, O), lambda i: (0, 0)),
                pl.BlockSpec((1, O), lambda i: (0, 0)),
            ],
            out_specs=pl.BlockSpec((M, O), lambda i: (0, 0)),
        ),
    )(hs2d, w_out_t, b_out)

    out = out2d.reshape(B, t_pad, O)[:, :T, :]
    return [out]


def _reference_forward(x, params):
    """Pure-JAX reference matching nn.LSTM(batch_first=True) + Linear."""
    w_ih = params["w_ih"].astype(jnp.float32)
    w_hh = params["w_hh"].astype(jnp.float32)
    b = (params["b_ih"] + params["b_hh"]).astype(jnp.float32)
    w_out = params["w_out"].astype(jnp.float32)
    b_out = params["b_out"].astype(jnp.float32)
    B, T, F = x.shape
    H = w_hh.shape[1]

    def step(carry, x_t):
        h, c = carry
        gates = x_t @ w_ih.T + h @ w_hh.T + b
        i = jax.nn.sigmoid(gates[:, 0 * H:1 * H])
        f = jax.nn.sigmoid(gates[:, 1 * H:2 * H])
        g = jnp.tanh(gates[:, 2 * H:3 * H])
        o = jax.nn.sigmoid(gates[:, 3 * H:4 * H])
        c = f * c + i * g
        h = o * jnp.tanh(c)
        return (h, c), h

    h0 = jnp.zeros((B, H), jnp.float32)
    c0 = jnp.zeros((B, H), jnp.float32)
    _, hs = lax.scan(step, (h0, c0), jnp.transpose(x, (1, 0, 2)))
    hs = jnp.transpose(hs, (1, 0, 2))              # (B, T, H)
    return hs @ w_out.T + b_out


if __name__ == "__main__":
    # Small, forward-consistent shapes:
    #   feature_size F=32, lstm_size H=32 (stand-in for 512), out_size O=7
    #   (num_classes, matching the 7-entry class-weight vector), batch B=2,
    #   seq_len T=8.
    B, T, F, H, O = 2, 8, 32, 32, 7

    key = jax.random.PRNGKey(0)
    k = jax.random.split(key, 7)
    scale = 0.1
    params = {
        "w_ih": scale * jax.random.normal(k[0], (4 * H, F), jnp.float32),
        "w_hh": scale * jax.random.normal(k[1], (4 * H, H), jnp.float32),
        "b_ih": scale * jax.random.normal(k[2], (4 * H,), jnp.float32),
        "b_hh": scale * jax.random.normal(k[3], (4 * H,), jnp.float32),
        "w_out": scale * jax.random.normal(k[4], (O, H), jnp.float32),
        "b_out": scale * jax.random.normal(k[5], (O,), jnp.float32),
    }
    x = jax.random.normal(k[6], (B, T, F), jnp.float32)

    out_list = lstm_head_forward(x, params)
    out = jax.block_until_ready(out_list[0])

    ref = _reference_forward(x, params)
    assert out.shape == (B, T, O), out.shape
    assert jnp.allclose(out, ref, atol=5e-5, rtol=1e-4), \
        float(jnp.max(jnp.abs(out - ref)))

    print("KERNEL_OK")
</pallas_src>

<mosaic_0001>
module attributes {stable_mosaic.version = 11 : i64} {
  func.func @_lstm_recurrence_kernel(%arg0: i32, %arg1: memref<2x8x32xf32, #tpu.memory_space<vmem>>, %arg2: memref<32x128xf32, #tpu.memory_space<vmem>>, %arg3: memref<32x128xf32, #tpu.memory_space<vmem>>, %arg4: memref<1x128xf32, #tpu.memory_space<vmem>>, %arg5: memref<2x8x32xf32, #tpu.memory_space<vmem>>, %arg6: memref<2x32xf32, #tpu.memory_space<vmem>>, %arg7: memref<2x32xf32, #tpu.memory_space<vmem>>) attributes {dimension_semantics = [#tpu.dimension_semantics<arbitrary>], iteration_bounds = array<i64: 1>, scalar_prefetch = 0 : i64, scratch_operands = 2 : i64, tpu.core_type = #tpu.core_type<tc>, window_params = [{transform_indices = @transform_0, window_bounds = array<i64: 2, 8, 32>}, {pipeline_mode = #tpu.pipeline_mode<synchronous>, transform_indices = @transform_1, window_bounds = array<i64: 32, 128>}, {pipeline_mode = #tpu.pipeline_mode<synchronous>, transform_indices = @transform_2, window_bounds = array<i64: 32, 128>}, {pipeline_mode = #tpu.pipeline_mode<synchronous>, transform_indices = @transform_3, window_bounds = array<i64: 1, 128>}, {transform_indices = @transform_4, window_bounds = array<i64: 2, 8, 32>}]} {
    %c0_i32 = arith.constant 0 : i32
    %0 = arith.cmpi eq, %arg0, %c0_i32 : i32
    %1 = arith.extui %0 : i1 to i32
    %c0_i32_0 = arith.constant 0 : i32
    %2 = arith.cmpi ne, %1, %c0_i32_0 : i32
    scf.if %2 {
      %cst_114 = arith.constant 0.000000e+00 : f32
      %320 = vector.broadcast %cst_114 : f32 to vector<2x32xf32>
      %c0_115 = arith.constant 0 : index
      %c0_116 = arith.constant 0 : index
      %321 = vector.load %arg6[%c0_115, %c0_116] : memref<2x32xf32, #tpu.memory_space<vmem>>, vector<2x32xf32>
      tpu.vector_store %arg6[%c0_115, %c0_116], %320 {strides = array<i32>} : memref<2x32xf32, #tpu.memory_space<vmem>>, vector<2x32xf32>,
      %cst_117 = arith.constant 0.000000e+00 : f32
      %322 = vector.broadcast %cst_117 : f32 to vector<2x32xf32>
      %c0_118 = arith.constant 0 : index
      %c0_119 = arith.constant 0 : index
      %323 = vector.load %arg7[%c0_118, %c0_119] : memref<2x32xf32, #tpu.memory_space<vmem>>, vector<2x32xf32>
      tpu.vector_store %arg7[%c0_118, %c0_119], %322 {strides = array<i32>} : memref<2x32xf32, #tpu.memory_space<vmem>>, vector<2x32xf32>,
    } else {
    }
    %c0 = arith.constant 0 : index
    %c0_1 = arith.constant 0 : index
    %c0_2 = arith.constant 0 : index
    %3 = vector.load %arg1[%c0, %c0_1, %c0_2] : memref<2x8x32xf32, #tpu.memory_space<vmem>>, vector<2x8x32xf32>
    %4 = vector.shape_cast %3 : vector<2x8x32xf32> to vector<16x32xf32>
    %c0_3 = arith.constant 0 : index
    %c0_4 = arith.constant 0 : index
    %5 = vector.load %arg2[%c0_3, %c0_4] : memref<32x128xf32, #tpu.memory_space<vmem>>, vector<32x128xf32>
    %cst = arith.constant dense<0.000000e+00> : vector<16x128xf32>
    %6 = tpu.matmul %4, %5, %cst {dimension_numbers = #tpu.dot_dimension_numbers<[1], [0], [0], [1], [0, 0, 1, 1], [], []>} : vector<16x32xf32>, vector<32x128xf32>, vector<16x128xf32> -> vector<16x128xf32>
    %c0_5 = arith.constant 0 : index
    %c0_6 = arith.constant 0 : index
    %7 = vector.load %arg4[%c0_5, %c0_6] : memref<1x128xf32, #tpu.memory_space<vmem>>, vector<1x128xf32>
    %8 = vector.broadcast %7 : vector<1x128xf32> to vector<16x128xf32>
    %9 = arith.addf %6, %8 : vector<16x128xf32>
    %10 = vector.shape_cast %9 : vector<16x128xf32> to vector<2x8x128xf32>
    %c0_7 = arith.constant 0 : index
    %c0_8 = arith.constant 0 : index
    %11 = vector.load %arg3[%c0_7, %c0_8] : memref<32x128xf32, #tpu.memory_space<vmem>>, vector<32x128xf32>
    %c0_9 = arith.constant 0 : index
    %c0_10 = arith.constant 0 : index
    %12 = vector.load %arg6[%c0_9, %c0_10] : memref<2x32xf32, #tpu.memory_space<vmem>>, vector<2x32xf32>
    %c0_11 = arith.constant 0 : index
    %c0_12 = arith.constant 0 : index
    %13 = vector.load %arg7[%c0_11, %c0_12] : memref<2x32xf32, #tpu.memory_space<vmem>>, vector<2x32xf32>
    %14 = vector.extract_strided_slice %10 {offsets = [0, 0, 0], sizes = [2, 1, 128], strides = [1, 1, 1]} : vector<2x8x128xf32> to vector<2x1x128xf32>
    %15 = vector.shape_cast %14 : vector<2x1x128xf32> to vector<2x128xf32>
    %cst_13 = arith.constant dense<0.000000e+00> : vector<2x128xf32>
    %16 = tpu.matmul %12, %11, %cst_13 {dimension_numbers = #tpu.dot_dimension_numbers<[1], [0], [0], [1], [0, 0, 1, 1], [], []>} : vector<2x32xf32>, vector<32x128xf32>, vector<2x128xf32> -> vector<2x128xf32>
    %17 = arith.addf %15, %16 : vector<2x128xf32>
    %18 = vector.extract_strided_slice %17 {offsets = [0, 0], sizes = [2, 32], strides = [1, 1]} : vector<2x128xf32> to vector<2x32xf32>
    %cst_14 = arith.constant 5.000000e-01 : f32
    %19 = vector.broadcast %cst_14 : f32 to vector<2x32xf32>
    %20 = arith.mulf %19, %18 : vector<2x32xf32>
    %21 = math.tanh %20 : vector<2x32xf32>
    %cst_15 = arith.constant 1.000000e+00 : f32
    %22 = vector.broadcast %cst_15 : f32 to vector<2x32xf32>
    %23 = arith.addf %22, %21 : vector<2x32xf32>
    %cst_16 = arith.constant 5.000000e-01 : f32
    %24 = vector.broadcast %cst_16 : f32 to vector<2x32xf32>
    %25 = arith.mulf %24, %23 : vector<2x32xf32>
    %26 = vector.extract_strided_slice %17 {offsets = [0, 32], sizes = [2, 32], strides = [1, 1]} : vector<2x128xf32> to vector<2x32xf32>
    %cst_17 = arith.constant 5.000000e-01 : f32
    %27 = vector.broadcast %cst_17 : f32 to vector<2x32xf32>
    %28 = arith.mulf %27, %26 : vector<2x32xf32>
    %29 = math.tanh %28 : vector<2x32xf32>
    %cst_18 = arith.constant 1.000000e+00 : f32
    %30 = vector.broadcast %cst_18 : f32 to vector<2x32xf32>
    %31 = arith.addf %30, %29 : vector<2x32xf32>
    %cst_19 = arith.constant 5.000000e-01 : f32
    %32 = vector.broadcast %cst_19 : f32 to vector<2x32xf32>
    %33 = arith.mulf %32, %31 : vector<2x32xf32>
    %34 = vector.extract_strided_slice %17 {offsets = [0, 64], sizes = [2, 32], strides = [1, 1]} : vector<2x128xf32> to vector<2x32xf32>
    %35 = math.tanh %34 : vector<2x32xf32>
    %36 = vector.extract_strided_slice %17 {offsets = [0, 96], sizes = [2, 32], strides = [1, 1]} : vector<2x128xf32> to vector<2x32xf32>
    %cst_20 = arith.constant 5.000000e-01 : f32
    %37 = vector.broadcast %cst_20 : f32 to vector<2x32xf32>
    %38 = arith.mulf %37, %36 : vector<2x32xf32>
    %39 = math.tanh %38 : vector<2x32xf32>
    %cst_21 = arith.constant 1.000000e+00 : f32
    %40 = vector.broadcast %cst_21 : f32 to vector<2x32xf32>
    %41 = arith.addf %40, %39 : vector<2x32xf32>
    %cst_22 = arith.constant 5.000000e-01 : f32
    %42 = vector.broadcast %cst_22 : f32 to vector<2x32xf32>
    %43 = arith.mulf %42, %41 : vector<2x32xf32>
    %44 = arith.mulf %33, %13 : vector<2x32xf32>
    %45 = arith.mulf %25, %35 : vector<2x32xf32>
    %46 = arith.addf %44, %45 : vector<2x32xf32>
    %47 = math.tanh %46 : vector<2x32xf32>
    %48 = arith.mulf %43, %47 : vector<2x32xf32>
    %c0_23 = arith.constant 0 : index
    %c0_24 = arith.constant 0 : index
    %c0_25 = arith.constant 0 : index
    %49 = vector.load %arg5[%c0_23, %c0_24, %c0_25] : memref<2x8x32xf32, #tpu.memory_space<vmem>>, vector<2x1x32xf32>
    %50 = vector.shape_cast %49 : vector<2x1x32xf32> to vector<2x32xf32>
    %51 = vector.shape_cast %48 : vector<2x32xf32> to vector<2x1x32xf32>
    tpu.vector_store %arg5[%c0_23, %c0_24, %c0_25], %51 {strides = array<i32>} : memref<2x8x32xf32, #tpu.memory_space<vmem>>, vector<2x1x32xf32>,
    %52 = vector.extract_strided_slice %10 {offsets = [0, 1, 0], sizes = [2, 1, 128], strides = [1, 1, 1]} : vector<2x8x128xf32> to vector<2x1x128xf32>
    %53 = vector.shape_cast %52 : vector<2x1x128xf32> to vector<2x128xf32>
    %cst_26 = arith.constant dense<0.000000e+00> : vector<2x128xf32>
    %54 = tpu.matmul %48, %11, %cst_26 {dimension_numbers = #tpu.dot_dimension_numbers<[1], [0], [0], [1], [0, 0, 1, 1], [], []>} : vector<2x32xf32>, vector<32x128xf32>, vector<2x128xf32> -> vector<2x128xf32>
    %55 = arith.addf %53, %54 : vector<2x128xf32>
    %56 = vector.extract_strided_slice %55 {offsets = [0, 0], sizes = [2, 32], strides = [1, 1]} : vector<2x128xf32> to vector<2x32xf32>
    %cst_27 = arith.constant 5.000000e-01 : f32
    %57 = vector.broadcast %cst_27 : f32 to vector<2x32xf32>
    %58 = arith.mulf %57, %56 : vector<2x32xf32>
    %59 = math.tanh %58 : vector<2x32xf32>
    %cst_28 = arith.constant 1.000000e+00 : f32
    %60 = vector.broadcast %cst_28 : f32 to vector<2x32xf32>
    %61 = arith.addf %60, %59 : vector<2x32xf32>
    %cst_29 = arith.constant 5.000000e-01 : f32
    %62 = vector.broadcast %cst_29 : f32 to vector<2x32xf32>
    %63 = arith.mulf %62, %61 : vector<2x32xf32>
    %64 = vector.extract_strided_slice %55 {offsets = [0, 32], sizes = [2, 32], strides = [1, 1]} : vector<2x128xf32> to vector<2x32xf32>
    %cst_30 = arith.constant 5.000000e-01 : f32
    %65 = vector.broadcast %cst_30 : f32 to vector<2x32xf32>
    %66 = arith.mulf %65, %64 : vector<2x32xf32>
    %67 = math.tanh %66 : vector<2x32xf32>
    %cst_31 = arith.constant 1.000000e+00 : f32
    %68 = vector.broadcast %cst_31 : f32 to vector<2x32xf32>
    %69 = arith.addf %68, %67 : vector<2x32xf32>
    %cst_32 = arith.constant 5.000000e-01 : f32
    %70 = vector.broadcast %cst_32 : f32 to vector<2x32xf32>
    %71 = arith.mulf %70, %69 : vector<2x32xf32>
    %72 = vector.extract_strided_slice %55 {offsets = [0, 64], sizes = [2, 32], strides = [1, 1]} : vector<2x128xf32> to vector<2x32xf32>
    %73 = math.tanh %72 : vector<2x32xf32>
    %74 = vector.extract_strided_slice %55 {offsets = [0, 96], sizes = [2, 32], strides = [1, 1]} : vector<2x128xf32> to vector<2x32xf32>
    %cst_33 = arith.constant 5.000000e-01 : f32
    %75 = vector.broadcast %cst_33 : f32 to vector<2x32xf32>
    %76 = arith.mulf %75, %74 : vector<2x32xf32>
    %77 = math.tanh %76 : vector<2x32xf32>
    %cst_34 = arith.constant 1.000000e+00 : f32
    %78 = vector.broadcast %cst_34 : f32 to vector<2x32xf32>
    %79 = arith.addf %78, %77 : vector<2x32xf32>
    %cst_35 = arith.constant 5.000000e-01 : f32
    %80 = vector.broadcast %cst_35 : f32 to vector<2x32xf32>
    %81 = arith.mulf %80, %79 : vector<2x32xf32>
    %82 = arith.mulf %71, %46 : vector<2x32xf32>
    %83 = arith.mulf %63, %73 : vector<2x32xf32>
    %84 = arith.addf %82, %83 : vector<2x32xf32>
    %85 = math.tanh %84 : vector<2x32xf32>
    %86 = arith.mulf %81, %85 : vector<2x32xf32>
    %c0_36 = arith.constant 0 : index
    %c1 = arith.constant 1 : index
    %c0_37 = arith.constant 0 : index
    %87 = vector.load %arg5[%c0_36, %c1, %c0_37] : memref<2x8x32xf32, #tpu.memory_space<vmem>>, vector<2x1x32xf32>
    %88 = vector.shape_cast %87 : vector<2x1x32xf32> to vector<2x32xf32>
    %89 = vector.shape_cast %86 : vector<2x32xf32> to vector<2x1x32xf32>
    tpu.vector_store %arg5[%c0_36, %c1, %c0_37], %89 {strides = array<i32>} : memref<2x8x32xf32, #tpu.memory_space<vmem>>, vector<2x1x32xf32>,
    %90 = vector.extract_strided_slice %10 {offsets = [0, 2, 0], sizes = [2, 1, 128], strides = [1, 1, 1]} : vector<2x8x128xf32> to vector<2x1x128xf32>
    %91 = vector.shape_cast %90 : vector<2x1x128xf32> to vector<2x128xf32>
    %cst_38 = arith.constant dense<0.000000e+00> : vector<2x128xf32>
    %92 = tpu.matmul %86, %11, %cst_38 {dimension_numbers = #tpu.dot_dimension_numbers<[1], [0], [0], [1], [0, 0, 1, 1], [], []>} : vector<2x32xf32>, vector<32x128xf32>, vector<2x128xf32> -> vector<2x128xf32>
    %93 = arith.addf %91, %92 : vector<2x128xf32>
    %94 = vector.extract_strided_slice %93 {offsets = [0, 0], sizes = [2, 32], strides = [1, 1]} : vector<2x128xf32> to vector<2x32xf32>
    %cst_39 = arith.constant 5.000000e-01 : f32
    %95 = vector.broadcast %cst_39 : f32 to vector<2x32xf32>
    %96 = arith.mulf %95, %94 : vector<2x32xf32>
    %97 = math.tanh %96 : vector<2x32xf32>
    %cst_40 = arith.constant 1.000000e+00 : f32
    %98 = vector.broadcast %cst_40 : f32 to vector<2x32xf32>
    %99 = arith.addf %98, %97 : vector<2x32xf32>
    %cst_41 = arith.constant 5.000000e-01 : f32
    %100 = vector.broadcast %cst_41 : f32 to vector<2x32xf32>
    %101 = arith.mulf %100, %99 : vector<2x32xf32>
    %102 = vector.extract_strided_slice %93 {offsets = [0, 32], sizes = [2, 32], strides = [1, 1]} : vector<2x128xf32> to vector<2x32xf32>
    %cst_42 = arith.constant 5.000000e-01 : f32
    %103 = vector.broadcast %cst_42 : f32 to vector<2x32xf32>
    %104 = arith.mulf %103, %102 : vector<2x32xf32>
    %105 = math.tanh %104 : vector<2x32xf32>
    %cst_43 = arith.constant 1.000000e+00 : f32
    %106 = vector.broadcast %cst_43 : f32 to vector<2x32xf32>
    %107 = arith.addf %106, %105 : vector<2x32xf32>
    %cst_44 = arith.constant 5.000000e-01 : f32
    %108 = vector.broadcast %cst_44 : f32 to vector<2x32xf32>
    %109 = arith.mulf %108, %107 : vector<2x32xf32>
    %110 = vector.extract_strided_slice %93 {offsets = [0, 64], sizes = [2, 32], strides = [1, 1]} : vector<2x128xf32> to vector<2x32xf32>
    %111 = math.tanh %110 : vector<2x32xf32>
    %112 = vector.extract_strided_slice %93 {offsets = [0, 96], sizes = [2, 32], strides = [1, 1]} : vector<2x128xf32> to vector<2x32xf32>
    %cst_45 = arith.constant 5.000000e-01 : f32
    %113 = vector.broadcast %cst_45 : f32 to vector<2x32xf32>
    %114 = arith.mulf %113, %112 : vector<2x32xf32>
    %115 = math.tanh %114 : vector<2x32xf32>
    %cst_46 = arith.constant 1.000000e+00 : f32
    %116 = vector.broadcast %cst_46 : f32 to vector<2x32xf32>
    %117 = arith.addf %116, %115 : vector<2x32xf32>
    %cst_47 = arith.constant 5.000000e-01 : f32
    %118 = vector.broadcast %cst_47 : f32 to vector<2x32xf32>
    %119 = arith.mulf %118, %117 : vector<2x32xf32>
    %120 = arith.mulf %109, %84 : vector<2x32xf32>
    %121 = arith.mulf %101, %111 : vector<2x32xf32>
    %122 = arith.addf %120, %121 : vector<2x32xf32>
    %123 = math.tanh %122 : vector<2x32xf32>
    %124 = arith.mulf %119, %123 : vector<2x32xf32>
    %c0_48 = arith.constant 0 : index
    %c2 = arith.constant 2 : index
    %c0_49 = arith.constant 0 : index
    %125 = vector.load %arg5[%c0_48, %c2, %c0_49] : memref<2x8x32xf32, #tpu.memory_space<vmem>>, vector<2x1x32xf32>
    %126 = vector.shape_cast %125 : vector<2x1x32xf32> to vector<2x32xf32>
    %127 = vector.shape_cast %124 : vector<2x32xf32> to vector<2x1x32xf32>
    tpu.vector_store %arg5[%c0_48, %c2, %c0_49], %127 {strides = array<i32>} : memref<2x8x32xf32, #tpu.memory_space<vmem>>, vector<2x1x32xf32>,
    %128 = vector.extract_strided_slice %10 {offsets = [0, 3, 0], sizes = [2, 1, 128], strides = [1, 1, 1]} : vector<2x8x128xf32> to vector<2x1x128xf32>
    %129 = vector.shape_cast %128 : vector<2x1x128xf32> to vector<2x128xf32>
    %cst_50 = arith.constant dense<0.000000e+00> : vector<2x128xf32>
    %130 = tpu.matmul %124, %11, %cst_50 {dimension_numbers = #tpu.dot_dimension_numbers<[1], [0], [0], [1], [0, 0, 1, 1], [], []>} : vector<2x32xf32>, vector<32x128xf32>, vector<2x128xf32> -> vector<2x128xf32>
    %131 = arith.addf %129, %130 : vector<2x128xf32>
    %132 = vector.extract_strided_slice %131 {offsets = [0, 0], sizes = [2, 32], strides = [1, 1]} : vector<2x128xf32> to vector<2x32xf32>
    %cst_51 = arith.constant 5.000000e-01 : f32
    %133 = vector.broadcast %cst_51 : f32 to vector<2x32xf32>
    %134 = arith.mulf %133, %132 : vector<2x32xf32>
    %135 = math.tanh %134 : vector<2x32xf32>
    %cst_52 = arith.constant 1.000000e+00 : f32
    %136 = vector.broadcast %cst_52 : f32 to vector<2x32xf32>
    %137 = arith.addf %136, %135 : vector<2x32xf32>
    %cst_53 = arith.constant 5.000000e-01 : f32
    %138 = vector.broadcast %cst_53 : f32 to vector<2x32xf32>
    %139 = arith.mulf %138, %137 : vector<2x32xf32>
    %140 = vector.extract_strided_slice %131 {offsets = [0, 32], sizes = [2, 32], strides = [1, 1]} : vector<2x128xf32> to vector<2x32xf32>
    %cst_54 = arith.constant 5.000000e-01 : f32
    %141 = vector.broadcast %cst_54 : f32 to vector<2x32xf32>
    %142 = arith.mulf %141, %140 : vector<2x32xf32>
    %143 = math.tanh %142 : vector<2x32xf32>
    %cst_55 = arith.constant 1.000000e+00 : f32
    %144 = vector.broadcast %cst_55 : f32 to vector<2x32xf32>
    %145 = arith.addf %144, %143 : vector<2x32xf32>
    %cst_56 = arith.constant 5.000000e-01 : f32
    %146 = vector.broadcast %cst_56 : f32 to vector<2x32xf32>
    %147 = arith.mulf %146, %145 : vector<2x32xf32>
    %148 = vector.extract_strided_slice %131 {offsets = [0, 64], sizes = [2, 32], strides = [1, 1]} : vector<2x128xf32> to vector<2x32xf32>
    %149 = math.tanh %148 : vector<2x32xf32>
    %150 = vector.extract_strided_slice %131 {offsets = [0, 96], sizes = [2, 32], strides = [1, 1]} : vector<2x128xf32> to vector<2x32xf32>
    %cst_57 = arith.constant 5.000000e-01 : f32
    %151 = vector.broadcast %cst_57 : f32 to vector<2x32xf32>
    %152 = arith.mulf %151, %150 : vector<2x32xf32>
    %153 = math.tanh %152 : vector<2x32xf32>
    %cst_58 = arith.constant 1.000000e+00 : f32
    %154 = vector.broadcast %cst_58 : f32 to vector<2x32xf32>
    %155 = arith.addf %154, %153 : vector<2x32xf32>
    %cst_59 = arith.constant 5.000000e-01 : f32
    %156 = vector.broadcast %cst_59 : f32 to vector<2x32xf32>
    %157 = arith.mulf %156, %155 : vector<2x32xf32>
    %158 = arith.mulf %147, %122 : vector<2x32xf32>
    %159 = arith.mulf %139, %149 : vector<2x32xf32>
    %160 = arith.addf %158, %159 : vector<2x32xf32>
    %161 = math.tanh %160 : vector<2x32xf32>
    %162 = arith.mulf %157, %161 : vector<2x32xf32>
    %c0_60 = arith.constant 0 : index
    %c3 = arith.constant 3 : index
    %c0_61 = arith.constant 0 : index
    %163 = vector.load %arg5[%c0_60, %c3, %c0_61] : memref<2x8x32xf32, #tpu.memory_space<vmem>>, vector<2x1x32xf32>
    %164 = vector.shape_cast %163 : vector<2x1x32xf32> to vector<2x32xf32>
    %165 = vector.shape_cast %162 : vector<2x32xf32> to vector<2x1x32xf32>
    tpu.vector_store %arg5[%c0_60, %c3, %c0_61], %165 {strides = array<i32>} : memref<2x8x32xf32, #tpu.memory_space<vmem>>, vector<2x1x32xf32>,
    %166 = vector.extract_strided_slice %10 {offsets = [0, 4, 0], sizes = [2, 1, 128], strides = [1, 1, 1]} : vector<2x8x128xf32> to vector<2x1x128xf32>
    %167 = vector.shape_cast %166 : vector<2x1x128xf32> to vector<2x128xf32>
    %cst_62 = arith.constant dense<0.000000e+00> : vector<2x128xf32>
    %168 = tpu.matmul %162, %11, %cst_62 {dimension_numbers = #tpu.dot_dimension_numbers<[1], [0], [0], [1], [0, 0, 1, 1], [], []>} : vector<2x32xf32>, vector<32x128xf32>, vector<2x128xf32> -> vector<2x128xf32>
    %169 = arith.addf %167, %168 : vector<2x128xf32>
    %170 = vector.extract_strided_slice %169 {offsets = [0, 0], sizes = [2, 32], strides = [1, 1]} : vector<2x128xf32> to vector<2x32xf32>
    %cst_63 = arith.constant 5.000000e-01 : f32
    %171 = vector.broadcast %cst_63 : f32 to vector<2x32xf32>
    %172 = arith.mulf %171, %170 : vector<2x32xf32>
    %173 = math.tanh %172 : vector<2x32xf32>
    %cst_64 = arith.constant 1.000000e+00 : f32
    %174 = vector.broadcast %cst_64 : f32 to vector<2x32xf32>
    %175 = arith.addf %174, %173 : vector<2x32xf32>
    %cst_65 = arith.constant 5.000000e-01 : f32
    %176 = vector.broadcast %cst_65 : f32 to vector<2x32xf32>
    %177 = arith.mulf %176, %175 : vector<2x32xf32>
    %178 = vector.extract_strided_slice %169 {offsets = [0, 32], sizes = [2, 32], strides = [1, 1]} : vector<2x128xf32> to vector<2x32xf32>
    %cst_66 = arith.constant 5.000000e-01 : f32
    %179 = vector.broadcast %cst_66 : f32 to vector<2x32xf32>
    %180 = arith.mulf %179, %178 : vector<2x32xf32>
    %181 = math.tanh %180 : vector<2x32xf32>
    %cst_67 = arith.constant 1.000000e+00 : f32
    %182 = vector.broadcast %cst_67 : f32 to vector<2x32xf32>
    %183 = arith.addf %182, %181 : vector<2x32xf32>
    %cst_68 = arith.constant 5.000000e-01 : f32
    %184 = vector.broadcast %cst_68 : f32 to vector<2x32xf32>
    %185 = arith.mulf %184, %183 : vector<2x32xf32>
    %186 = vector.extract_strided_slice %169 {offsets = [0, 64], sizes = [2, 32], strides = [1, 1]} : vector<2x128xf32> to vector<2x32xf32>
    %187 = math.tanh %186 : vector<2x32xf32>
    %188 = vector.extract_strided_slice %169 {offsets = [0, 96], sizes = [2, 32], strides = [1, 1]} : vector<2x128xf32> to vector<2x32xf32>
    %cst_69 = arith.constant 5.000000e-01 : f32
    %189 = vector.broadcast %cst_69 : f32 to vector<2x32xf32>
    %190 = arith.mulf %189, %188 : vector<2x32xf32>
    %191 = math.tanh %190 : vector<2x32xf32>
    %cst_70 = arith.constant 1.000000e+00 : f32
    %192 = vector.broadcast %cst_70 : f32 to vector<2x32xf32>
    %193 = arith.addf %192, %191 : vector<2x32xf32>
    %cst_71 = arith.constant 5.000000e-01 : f32
    %194 = vector.broadcast %cst_71 : f32 to vector<2x32xf32>
    %195 = arith.mulf %194, %193 : vector<2x32xf32>
    %196 = arith.mulf %185, %160 : vector<2x32xf32>
    %197 = arith.mulf %177, %187 : vector<2x32xf32>
    %198 = arith.addf %196, %197 : vector<2x32xf32>
    %199 = math.tanh %198 : vector<2x32xf32>
    %200 = arith.mulf %195, %199 : vector<2x32xf32>
    %c0_72 = arith.constant 0 : index
    %c4 = arith.constant 4 : index
    %c0_73 = arith.constant 0 : index
    %201 = vector.load %arg5[%c0_72, %c4, %c0_73] : memref<2x8x32xf32, #tpu.memory_space<vmem>>, vector<2x1x32xf32>
    %202 = vector.shape_cast %201 : vector<2x1x32xf32> to vector<2x32xf32>
    %203 = vector.shape_cast %200 : vector<2x32xf32> to vector<2x1x32xf32>
    tpu.vector_store %arg5[%c0_72, %c4, %c0_73], %203 {strides = array<i32>} : memref<2x8x32xf32, #tpu.memory_space<vmem>>, vector<2x1x32xf32>,
    %204 = vector.extract_strided_slice %10 {offsets = [0, 5, 0], sizes = [2, 1, 128], strides = [1, 1, 1]} : vector<2x8x128xf32> to vector<2x1x128xf32>
    %205 = vector.shape_cast %204 : vector<2x1x128xf32> to vector<2x128xf32>
    %cst_74 = arith.constant dense<0.000000e+00> : vector<2x128xf32>
    %206 = tpu.matmul %200, %11, %cst_74 {dimension_numbers = #tpu.dot_dimension_numbers<[1], [0], [0], [1], [0, 0, 1, 1], [], []>} : vector<2x32xf32>, vector<32x128xf32>, vector<2x128xf32> -> vector<2x128xf32>
    %207 = arith.addf %205, %206 : vector<2x128xf32>
    %208 = vector.extract_strided_slice %207 {offsets = [0, 0], sizes = [2, 32], strides = [1, 1]} : vector<2x128xf32> to vector<2x32xf32>
    %cst_75 = arith.constant 5.000000e-01 : f32
    %209 = vector.broadcast %cst_75 : f32 to vector<2x32xf32>
    %210 = arith.mulf %209, %208 : vector<2x32xf32>
    %211 = math.tanh %210 : vector<2x32xf32>
    %cst_76 = arith.constant 1.000000e+00 : f32
    %212 = vector.broadcast %cst_76 : f32 to vector<2x32xf32>
    %213 = arith.addf %212, %211 : vector<2x32xf32>
    %cst_77 = arith.constant 5.000000e-01 : f32
    %214 = vector.broadcast %cst_77 : f32 to vector<2x32xf32>
    %215 = arith.mulf %214, %213 : vector<2x32xf32>
    %216 = vector.extract_strided_slice %207 {offsets = [0, 32], sizes = [2, 32], strides = [1, 1]} : vector<2x128xf32> to vector<2x32xf32>
    %cst_78 = arith.constant 5.000000e-01 : f32
    %217 = vector.broadcast %cst_78 : f32 to vector<2x32xf32>
    %218 = arith.mulf %217, %216 : vector<2x32xf32>
    %219 = math.tanh %218 : vector<2x32xf32>
    %cst_79 = arith.constant 1.000000e+00 : f32
    %220 = vector.broadcast %cst_79 : f32 to vector<2x32xf32>
    %221 = arith.addf %220, %219 : vector<2x32xf32>
    %cst_80 = arith.constant 5.000000e-01 : f32
    %222 = vector.broadcast %cst_80 : f32 to vector<2x32xf32>
    %223 = arith.mulf %222, %221 : vector<2x32xf32>
    %224 = vector.extract_strided_slice %207 {offsets = [0, 64], sizes = [2, 32], strides = [1, 1]} : vector<2x128xf32> to vector<2x32xf32>
    %225 = math.tanh %224 : vector<2x32xf32>
    %226 = vector.extract_strided_slice %207 {offsets = [0, 96], sizes = [2, 32], strides = [1, 1]} : vector<2x128xf32> to vector<2x32xf32>
    %cst_81 = arith.constant 5.000000e-01 : f32
    %227 = vector.broadcast %cst_81 : f32 to vector<2x32xf32>
    %228 = arith.mulf %227, %226 : vector<2x32xf32>
    %229 = math.tanh %228 : vector<2x32xf32>
    %cst_82 = arith.constant 1.000000e+00 : f32
    %230 = vector.broadcast %cst_82 : f32 to vector<2x32xf32>
    %231 = arith.addf %230, %229 : vector<2x32xf32>
    %cst_83 = arith.constant 5.000000e-01 : f32
    %232 = vector.broadcast %cst_83 : f32 to vector<2x32xf32>
    %233 = arith.mulf %232, %231 : vector<2x32xf32>
    %234 = arith.mulf %223, %198 : vector<2x32xf32>
    %235 = arith.mulf %215, %225 : vector<2x32xf32>
    %236 = arith.addf %234, %235 : vector<2x32xf32>
    %237 = math.tanh %236 : vector<2x32xf32>
    %238 = arith.mulf %233, %237 : vector<2x32xf32>
    %c0_84 = arith.constant 0 : index
    %c5 = arith.constant 5 : index
    %c0_85 = arith.constant 0 : index
    %239 = vector.load %arg5[%c0_84, %c5, %c0_85] : memref<2x8x32xf32, #tpu.memory_space<vmem>>, vector<2x1x32xf32>
    %240 = vector.shape_cast %239 : vector<2x1x32xf32> to vector<2x32xf32>
    %241 = vector.shape_cast %238 : vector<2x32xf32> to vector<2x1x32xf32>
    tpu.vector_store %arg5[%c0_84, %c5, %c0_85], %241 {strides = array<i32>} : memref<2x8x32xf32, #tpu.memory_space<vmem>>, vector<2x1x32xf32>,
    %242 = vector.extract_strided_slice %10 {offsets = [0, 6, 0], sizes = [2, 1, 128], strides = [1, 1, 1]} : vector<2x8x128xf32> to vector<2x1x128xf32>
    %243 = vector.shape_cast %242 : vector<2x1x128xf32> to vector<2x128xf32>
    %cst_86 = arith.constant dense<0.000000e+00> : vector<2x128xf32>
    %244 = tpu.matmul %238, %11, %cst_86 {dimension_numbers = #tpu.dot_dimension_numbers<[1], [0], [0], [1], [0, 0, 1, 1], [], []>} : vector<2x32xf32>, vector<32x128xf32>, vector<2x128xf32> -> vector<2x128xf32>
    %245 = arith.addf %243, %244 : vector<2x128xf32>
    %246 = vector.extract_strided_slice %245 {offsets = [0, 0], sizes = [2, 32], strides = [1, 1]} : vector<2x128xf32> to vector<2x32xf32>
    %cst_87 = arith.constant 5.000000e-01 : f32
    %247 = vector.broadcast %cst_87 : f32 to vector<2x32xf32>
    %248 = arith.mulf %247, %246 : vector<2x32xf32>
    %249 = math.tanh %248 : vector<2x32xf32>
    %cst_88 = arith.constant 1.000000e+00 : f32
    %250 = vector.broadcast %cst_88 : f32 to vector<2x32xf32>
    %251 = arith.addf %250, %249 : vector<2x32xf32>
    %cst_89 = arith.constant 5.000000e-01 : f32
    %252 = vector.broadcast %cst_89 : f32 to vector<2x32xf32>
    %253 = arith.mulf %252, %251 : vector<2x32xf32>
    %254 = vector.extract_strided_slice %245 {offsets = [0, 32], sizes = [2, 32], strides = [1, 1]} : vector<2x128xf32> to vector<2x32xf32>
    %cst_90 = arith.constant 5.000000e-01 : f32
    %255 = vector.broadcast %cst_90 : f32 to vector<2x32xf32>
    %256 = arith.mulf %255, %254 : vector<2x32xf32>
    %257 = math.tanh %256 : vector<2x32xf32>
    %cst_91 = arith.constant 1.000000e+00 : f32
    %258 = vector.broadcast %cst_91 : f32 to vector<2x32xf32>
    %259 = arith.addf %258, %257 : vector<2x32xf32>
    %cst_92 = arith.constant 5.000000e-01 : f32
    %260 = vector.broadcast %cst_92 : f32 to vector<2x32xf32>
    %261 = arith.mulf %260, %259 : vector<2x32xf32>
    %262 = vector.extract_strided_slice %245 {offsets = [0, 64], sizes = [2, 32], strides = [1, 1]} : vector<2x128xf32> to vector<2x32xf32>
    %263 = math.tanh %262 : vector<2x32xf32>
    %264 = vector.extract_strided_slice %245 {offsets = [0, 96], sizes = [2, 32], strides = [1, 1]} : vector<2x128xf32> to vector<2x32xf32>
    %cst_93 = arith.constant 5.000000e-01 : f32
    %265 = vector.broadcast %cst_93 : f32 to vector<2x32xf32>
    %266 = arith.mulf %265, %264 : vector<2x32xf32>
    %267 = math.tanh %266 : vector<2x32xf32>
    %cst_94 = arith.constant 1.000000e+00 : f32
    %268 = vector.broadcast %cst_94 : f32 to vector<2x32xf32>
    %269 = arith.addf %268, %267 : vector<2x32xf32>
    %cst_95 = arith.constant 5.000000e-01 : f32
    %270 = vector.broadcast %cst_95 : f32 to vector<2x32xf32>
    %271 = arith.mulf %270, %269 : vector<2x32xf32>
    %272 = arith.mulf %261, %236 : vector<2x32xf32>
    %273 = arith.mulf %253, %263 : vector<2x32xf32>
    %274 = arith.addf %272, %273 : vector<2x32xf32>
    %275 = math.tanh %274 : vector<2x32xf32>
    %276 = arith.mulf %271, %275 : vector<2x32xf32>
    %c0_96 = arith.constant 0 : index
    %c6 = arith.constant 6 : index
    %c0_97 = arith.constant 0 : index
    %277 = vector.load %arg5[%c0_96, %c6, %c0_97] : memref<2x8x32xf32, #tpu.memory_space<vmem>>, vector<2x1x32xf32>
    %278 = vector.shape_cast %277 : vector<2x1x32xf32> to vector<2x32xf32>
    %279 = vector.shape_cast %276 : vector<2x32xf32> to vector<2x1x32xf32>
    tpu.vector_store %arg5[%c0_96, %c6, %c0_97], %279 {strides = array<i32>} : memref<2x8x32xf32, #tpu.memory_space<vmem>>, vector<2x1x32xf32>,
    %280 = vector.extract_strided_slice %10 {offsets = [0, 7, 0], sizes = [2, 1, 128], strides = [1, 1, 1]} : vector<2x8x128xf32> to vector<2x1x128xf32>
    %281 = vector.shape_cast %280 : vector<2x1x128xf32> to vector<2x128xf32>
    %cst_98 = arith.constant dense<0.000000e+00> : vector<2x128xf32>
    %282 = tpu.matmul %276, %11, %cst_98 {dimension_numbers = #tpu.dot_dimension_numbers<[1], [0], [0], [1], [0, 0, 1, 1], [], []>} : vector<2x32xf32>, vector<32x128xf32>, vector<2x128xf32> -> vector<2x128xf32>
    %283 = arith.addf %281, %282 : vector<2x128xf32>
    %284 = vector.extract_strided_slice %283 {offsets = [0, 0], sizes = [2, 32], strides = [1, 1]} : vector<2x128xf32> to vector<2x32xf32>
    %cst_99 = arith.constant 5.000000e-01 : f32
    %285 = vector.broadcast %cst_99 : f32 to vector<2x32xf32>
    %286 = arith.mulf %285, %284 : vector<2x32xf32>
    %287 = math.tanh %286 : vector<2x32xf32>
    %cst_100 = arith.constant 1.000000e+00 : f32
    %288 = vector.broadcast %cst_100 : f32 to vector<2x32xf32>
    %289 = arith.addf %288, %287 : vector<2x32xf32>
    %cst_101 = arith.constant 5.000000e-01 : f32
    %290 = vector.broadcast %cst_101 : f32 to vector<2x32xf32>
    %291 = arith.mulf %290, %289 : vector<2x32xf32>
    %292 = vector.extract_strided_slice %283 {offsets = [0, 32], sizes = [2, 32], strides = [1, 1]} : vector<2x128xf32> to vector<2x32xf32>
    %cst_102 = arith.constant 5.000000e-01 : f32
    %293 = vector.broadcast %cst_102 : f32 to vector<2x32xf32>
    %294 = arith.mulf %293, %292 : vector<2x32xf32>
    %295 = math.tanh %294 : vector<2x32xf32>
    %cst_103 = arith.constant 1.000000e+00 : f32
    %296 = vector.broadcast %cst_103 : f32 to vector<2x32xf32>
    %297 = arith.addf %296, %295 : vector<2x32xf32>
    %cst_104 = arith.constant 5.000000e-01 : f32
    %298 = vector.broadcast %cst_104 : f32 to vector<2x32xf32>
    %299 = arith.mulf %298, %297 : vector<2x32xf32>
    %300 = vector.extract_strided_slice %283 {offsets = [0, 64], sizes = [2, 32], strides = [1, 1]} : vector<2x128xf32> to vector<2x32xf32>
    %301 = math.tanh %300 : vector<2x32xf32>
    %302 = vector.extract_strided_slice %283 {offsets = [0, 96], sizes = [2, 32], strides = [1, 1]} : vector<2x128xf32> to vector<2x32xf32>
    %cst_105 = arith.constant 5.000000e-01 : f32
    %303 = vector.broadcast %cst_105 : f32 to vector<2x32xf32>
    %304 = arith.mulf %303, %302 : vector<2x32xf32>
    %305 = math.tanh %304 : vector<2x32xf32>
    %cst_106 = arith.constant 1.000000e+00 : f32
    %306 = vector.broadcast %cst_106 : f32 to vector<2x32xf32>
    %307 = arith.addf %306, %305 : vector<2x32xf32>
    %cst_107 = arith.constant 5.000000e-01 : f32
    %308 = vector.broadcast %cst_107 : f32 to vector<2x32xf32>
    %309 = arith.mulf %308, %307 : vector<2x32xf32>
    %310 = arith.mulf %299, %274 : vector<2x32xf32>
    %311 = arith.mulf %291, %301 : vector<2x32xf32>
    %312 = arith.addf %310, %311 : vector<2x32xf32>
    %313 = math.tanh %312 : vector<2x32xf32>
    %314 = arith.mulf %309, %313 : vector<2x32xf32>
    %c0_108 = arith.constant 0 : index
    %c7 = arith.constant 7 : index
    %c0_109 = arith.constant 0 : index
    %315 = vector.load %arg5[%c0_108, %c7, %c0_109] : memref<2x8x32xf32, #tpu.memory_space<vmem>>, vector<2x1x32xf32>
    %316 = vector.shape_cast %315 : vector<2x1x32xf32> to vector<2x32xf32>
    %317 = vector.shape_cast %314 : vector<2x32xf32> to vector<2x1x32xf32>
    tpu.vector_store %arg5[%c0_108, %c7, %c0_109], %317 {strides = array<i32>} : memref<2x8x32xf32, #tpu.memory_space<vmem>>, vector<2x1x32xf32>,
    %c0_110 = arith.constant 0 : index
    %c0_111 = arith.constant 0 : index
    %318 = vector.load %arg6[%c0_110, %c0_111] : memref<2x32xf32, #tpu.memory_space<vmem>>, vector<2x32xf32>
    tpu.vector_store %arg6[%c0_110, %c0_111], %314 {strides = array<i32>} : memref<2x32xf32, #tpu.memory_space<vmem>>, vector<2x32xf32>,
    %c0_112 = arith.constant 0 : index
    %c0_113 = arith.constant 0 : index
    %319 = vector.load %arg7[%c0_112, %c0_113] : memref<2x32xf32, #tpu.memory_space<vmem>>, vector<2x32xf32>
    tpu.vector_store %arg7[%c0_112, %c0_113], %312 {strides = array<i32>} : memref<2x32xf32, #tpu.memory_space<vmem>>, vector<2x32xf32>,
    return
  }
  func.func @transform_0(%arg0: i32) -> (i32, i32, i32) {
    %c0_i32 = arith.constant 0 : i32
    %c0_i32_0 = arith.constant 0 : i32
    %c0_i32_1 = arith.constant 0 : i32
    return %c0_i32, %arg0, %c0_i32_0 : i32, i32, i32
  }
  func.func @transform_1(%arg0: i32) -> (i32, i32) {
    %c0_i32 = arith.constant 0 : i32
    %c0_i32_0 = arith.constant 0 : i32
    %c0_i32_1 = arith.constant 0 : i32
    return %c0_i32, %c0_i32_0 : i32, i32
  }
  func.func @transform_2(%arg0: i32) -> (i32, i32) {
    %c0_i32 = arith.constant 0 : i32
    %c0_i32_0 = arith.constant 0 : i32
    %c0_i32_1 = arith.constant 0 : i32
    return %c0_i32, %c0_i32_0 : i32, i32
  }
  func.func @transform_3(%arg0: i32) -> (i32, i32) {
    %c0_i32 = arith.constant 0 : i32
    %c0_i32_0 = arith.constant 0 : i32
    %c0_i32_1 = arith.constant 0 : i32
    return %c0_i32, %c0_i32_0 : i32, i32
  }
  func.func @transform_4(%arg0: i32) -> (i32, i32, i32) {
    %c0_i32 = arith.constant 0 : i32
    %c0_i32_0 = arith.constant 0 : i32
    %c0_i32_1 = arith.constant 0 : i32
    return %c0_i32, %arg0, %c0_i32_0 : i32, i32, i32
  }
}

</mosaic_0001>

<llo_original>
// kernel: tpu_custom_call.1
$region0: #{tpu_custom_call.1}
  #allocation0 [shape = 'u32[]', space=smem, size = 0x4, offset = 0x4, fixed_abs, tag = 'smem constant byte address 0x4 - core index']
  #allocation1 [shape = 'u32[144,128]{1,0:T(1,128)}', space=vmem, size = 0x12000, scoped, tag = 'internal scratch']
  #allocation2 [shape = 'f32[2,32]{1,0:T(2,128)}', space=vmem, size = 0x400, scoped, tag = 'scratch operand']
  #allocation3 [shape = 'f32[2,32]{1,0:T(2,128)}', space=vmem, size = 0x400, scoped, tag = 'scratch operand']
  %s0 = inlined_call_operand.hbm [shape: f32[2,8,32], index: 0, kind: input, shape index: {}]
  %s1 = inlined_call_operand.hbm [shape: f32[32,128], index: 1, kind: input, shape index: {}]
  %s2 = inlined_call_operand.hbm [shape: f32[32,128], index: 2, kind: input, shape index: {}]
  %s3 = inlined_call_operand.vmem [shape: f32[1,128], index: 3, kind: input, shape index: {}]
  %s4 = inlined_call_operand.hbm [shape: f32[2,8,32], index: 4, kind: output, shape index: {}]
  %s5 = sld [smem:[#allocation0]]
  $region42: #{tpu_custom_call.1} parent=0
    _
  %s7 = ssub.s32 1, %s5
  %s8 = scalar_select 0, %s7, %s5
  $region1: #{tpu_custom_call.1} parent=0
    #allocation4 [shape = 'u8[8192]{0}', space=vmem, size = 0x2000, scoped, tag = 'input window, operand 0, single buffered']
    #allocation5 [shape = 's32[1]{0}', space=sflag, size = 0x4, scoped, tag = 'scoped memory for tpu_custom_call.1']
    #allocation6 [shape = 's32[1]{0}', space=sflag, size = 0x4, scoped, tag = 'scoped memory for tpu_custom_call.1']
    #allocation7 [shape = 'u8[16384]{0}', space=vmem, size = 0x4000, scoped, tag = 'input window, operand 1, single buffered']
    #allocation8 [shape = 's32[1]{0}', space=sflag, size = 0x4, scoped, tag = 'scoped memory for tpu_custom_call.1']
    #allocation9 [shape = 'u8[16384]{0}', space=vmem, size = 0x4000, scoped, tag = 'input window, operand 2, single buffered']
    #allocation10 [shape = 'u8[8192]{0}', space=vmem, size = 0x2000, scoped, tag = 'output window, operand 0, single buffered']
    %9 = vsyncpa [#allocation5], 0
    %10 = vsyncpa [#allocation8], 0
    %11 = vsyncpa [#allocation6], 0
    // Predicated region
    $region2: #{tpu_custom_call.1} parent=1 // pred_check
      _
    $region3: #{tpu_custom_call.1} parent=1 // pred_check_branch
      %13 = sbr.rel (0) target = $region5
    $region4: #{tpu_custom_call.1} parent=1 // pred_region
      %s15 = ssub.s32 256, 256
      %16 = vsyncadd [#allocation5], %s15
      %s17 = sshll.u32 [#allocation4], 4
      %s18 = int_to_ptr.vmem [resolvable:$true] %s17
      %23 = dma.hbm_to_vmem [thread:$0]  %s0, 256, %s18, [#allocation5], 128, 128, 8
    $region5: #{tpu_custom_call.1} parent=1 // pred_fallthru
      _
    // Predicated region
    $region6: #{tpu_custom_call.1} parent=1 // pred_check
      _
    $region7: #{tpu_custom_call.1} parent=1 // pred_check_branch
      %25 = sbr.rel (0) target = $region9
    $region8: #{tpu_custom_call.1} parent=1 // pred_region
      %s27 = ssub.s32 512, 512
      %28 = vsyncadd [#allocation8], %s27
      %s29 = sshll.u32 [#allocation7], 4
      %s30 = int_to_ptr.vmem [resolvable:$true] %s29
      %35 = dma.hbm_to_vmem [thread:$0]  %s1, 512, %s30, [#allocation8], 128, 128, 8
    $region9: #{tpu_custom_call.1} parent=1 // pred_fallthru
      _
    // Predicated region
    $region10: #{tpu_custom_call.1} parent=1 // pred_check
      _
    $region11: #{tpu_custom_call.1} parent=1 // pred_check_branch
      %37 = sbr.rel (0) target = $region13
    $region12: #{tpu_custom_call.1} parent=1 // pred_region
      %s39 = ssub.s32 512, 512
      %40 = vsyncadd [#allocation8], %s39
      %s41 = sshll.u32 [#allocation9], 4
      %s42 = int_to_ptr.vmem [resolvable:$true] %s41
      %47 = dma.hbm_to_vmem [thread:$0]  %s2, 512, %s42, [#allocation8], 128, 128, 8
    $region13: #{tpu_custom_call.1} parent=1 // pred_fallthru
      _
    // Predicated region
    $region14: #{tpu_custom_call.1} parent=1 // pred_check
      _
    $region15: #{tpu_custom_call.1} parent=1 // pred_check_branch
      %49 = sbr.rel (0) target = $region17
    $region16: #{tpu_custom_call.1} parent=1 // pred_region
      _
    $region17: #{tpu_custom_call.1} parent=1 // pred_fallthru
      _
    // Predicated region
    $region18: #{tpu_custom_call.1} parent=1 // pred_check
      _
    $region19: #{tpu_custom_call.1} parent=1 // pred_check_branch
      %51 = sbr.rel (0) target = $region21
    $region20: #{tpu_custom_call.1} parent=1 // pred_region
      %52 = dma.done [#allocation5], 256
    $region21: #{tpu_custom_call.1} parent=1 // pred_fallthru
      _
    // Predicated region
    $region22: #{tpu_custom_call.1} parent=1 // pred_check
      _
    $region23: #{tpu_custom_call.1} parent=1 // pred_check_branch
      %54 = sbr.rel (0) target = $region25
    $region24: #{tpu_custom_call.1} parent=1 // pred_region
      %55 = dma.done [#allocation8], 512
    $region25: #{tpu_custom_call.1} parent=1 // pred_fallthru
      _
    // Predicated region
    $region26: #{tpu_custom_call.1} parent=1 // pred_check
      _
    $region27: #{tpu_custom_call.1} parent=1 // pred_check_branch
      %57 = sbr.rel (0) target = $region29
    $region28: #{tpu_custom_call.1} parent=1 // pred_region
      %58 = dma.done [#allocation8], 512
    $region29: #{tpu_custom_call.1} parent=1 // pred_fallthru
      _
    %p59 = scmp.eq.s32.totalorder 0, 0
    // Predicated region
    $region30: #{tpu_custom_call.1} parent=1 // pred_check
      %p60 = pneg %p59
    $region31: #{tpu_custom_call.1} parent=1 // pred_check_branch
      %62 = sbr.rel (%p60) target = $region33
    $region32: #{tpu_custom_call.1} parent=1 // pred_region
      %vm63 = vcmask 254976
      %64 = vst.msk [vmem:[#allocation2] sm:$0x3] %vm63, 0.0
      %65 = vst.msk [vmem:[#allocation3] sm:$0x3] %vm63, 0.0
    $region33: #{tpu_custom_call.1} parent=1 // pred_fallthru
      _
    %v66 = vld [vmem:[#allocation4] sm:$0xff]
    %v67 = vld [vmem:[#allocation4 + $0x8] sm:$0xff]
    %v68 = vld [vmem:[#allocation7] sm:$0xff]
    %v69 = vld [vmem:[#allocation7 + $0x8] sm:$0xff]
    %v70 = vld [vmem:[#allocation7 + $0x10] sm:$0xff]
    %v71 = vld [vmem:[#allocation7 + $0x18] sm:$0xff]
    %v72 = vld [vmem:[%s3] sm:$0x1]
    %v74 = vlaneseq
    %v75 = vshrl.u32 %v74, 7
    %v76 = vsub.s32 0, %v75
    %v77 = vrot.slane %v72, %v76
    %vm79 = vcmask 261120
    %v81 = vsel %vm79, %v66, 0
    %v84 = vsel %vm79, %v67, 0
    %86 = vmatprep.subr.mxu0 0.0
    %87 = vmatpush1.msra.mxu0 0.0
    %88 = vmatprep.subr.mxu0 0.0
    %89 = vmatpush1.msra.mxu0 0.0
    %90 = vmatprep.subr.mxu0 0.0
    %91 = vmatpush1.msra.mxu0 0.0
    %92 = vmatprep.subr.mxu0 0.0
    %93 = vmatpush1.msra.mxu0 0.0
    %94 = vmatprep.subr.mxu0 0.0
    %95 = vmatpush1.msra.mxu0 0.0
    %96 = vmatprep.subr.mxu0 0.0
    %97 = vmatpush1.msra.mxu0 0.0
    %98 = vmatprep.subr.mxu0 0.0
    %99 = vmatpush1.msra.mxu0 0.0
    %100 = vmatprep.subr.mxu0 0.0
    %101 = vmatpush1.msra.mxu0 0.0
    %102 = vmatprep.subr.mxu0 0.0
    %103 = vmatpush1.msra.mxu0 0.0
    %104 = vmatprep.subr.mxu0 0.0
    %105 = vmatpush1.msra.mxu0 0.0
    %106 = vmatprep.subr.mxu0 0.0
    %107 = vmatpush1.msra.mxu0 0.0
    %108 = vmatprep.subr.mxu0 0.0
    %109 = vmatpush1.msra.mxu0 0.0
    %110 = vmatprep.subr.mxu0 0.0
    %111 = vmatpush1.msra.mxu0 %v71
    %112 = vmatprep.subr.mxu0 0.0
    %113 = vmatpush1.msra.mxu0 %v70
    %114 = vmatprep.subr.mxu0 0.0
    %115 = vmatpush1.msra.mxu0 %v69
    %116 = vmatprep.subr.mxu0 0.0
    %117 = vmatpush1.msra.mxu0 %v68
    %118 = vmatprep.subr.mxu0 0.0
    %119 = vmatpush2.msra.mxu0 0.0
    %120 = vmatprep.subr.mxu0 0.0
    %121 = vmatpush2.msra.mxu0 0.0
    %122 = vmatprep.subr.mxu0 0.0
    %123 = vmatpush2.msra.mxu0 0.0
    %124 = vmatprep.subr.mxu0 0.0
    %125 = vmatpush2.msra.mxu0 0.0
    %126 = vmatprep.subr.mxu0 0.0
    %127 = vmatpush2.msra.mxu0 0.0
    %128 = vmatprep.subr.mxu0 0.0
    %129 = vmatpush2.msra.mxu0 0.0
    %130 = vmatprep.subr.mxu0 0.0
    %131 = vmatpush2.msra.mxu0 0.0
    %132 = vmatprep.subr.mxu0 0.0
    %133 = vmatpush2.msra.mxu0 0.0
    %134 = vmatprep.subr.mxu0 0.0
    %135 = vmatpush2.msra.mxu0 0.0
    %136 = vmatprep.subr.mxu0 0.0
    %137 = vmatpush2.msra.mxu0 0.0
    %138 = vmatprep.subr.mxu0 0.0
    %139 = vmatpush2.msra.mxu0 0.0
    %140 = vmatprep.subr.mxu0 0.0
    %141 = vmatpush2.msra.mxu0 0.0
    %142 = vmatprep.subr.mxu0 0.0
    %143 = vmatpush2.msra.mxu0 0.0
    %144 = vmatprep.subr.mxu0 0.0
    %145 = vmatpush2.msra.mxu0 0.0
    %146 = vmatprep.subr.mxu0 0.0
    %147 = vmatpush2.msra.mxu0 0.0
    %148 = vmatprep.subr.mxu0 0.0
    %149 = vmatpush2.msra.mxu0 0.0
    %150 = vmatprep.mubr.f32.mxu0 0.0
    %151 = vmatmul.mubr.f32.gmra.mxu0 %v81
    %v152 = vpop.f32.mrf.mxu0
    %v153 = vadd.f32 %v77, %v152
    %v154 = vpop.f32.mrf.mxu0
    %155 = vmatprep.mubr.f32.mxu0 0.0
    %156 = vmatmul.mubr.f32.gmra.mxu0 %v84
    %v157 = vpop.f32.mrf.mxu0
    %v158 = vadd.f32 %v77, %v157
    %v159 = vpop.f32.mrf.mxu0
    %160 = vdwg.mxu0
    %v161 = vld [vmem:[#allocation9] sm:$0xff]
    %v162 = vld [vmem:[#allocation9 + $0x8] sm:$0xff]
    %v163 = vld [vmem:[#allocation9 + $0x10] sm:$0xff]
    %v164 = vld [vmem:[#allocation9 + $0x18] sm:$0xff]
    %v165 = vld [vmem:[#allocation2] sm:$0x3]
    %v166 = vld [vmem:[#allocation3] sm:$0x3]
    %v168 = vsel %vm79, %v165, 0
    %170 = vmatprep.subr.mxu0 0.0
    %171 = vmatpush1.msra.mxu0 0.0
    %172 = vmatprep.subr.mxu0 0.0
    %173 = vmatpush1.msra.mxu0 0.0
    %174 = vmatprep.subr.mxu0 0.0
    %175 = vmatpush1.msra.mxu0 0.0
    %176 = vmatprep.subr.mxu0 0.0
    %177 = vmatpush1.msra.mxu0 0.0
    %178 = vmatprep.subr.mxu0 0.0
    %179 = vmatpush1.msra.mxu0 0.0
    %180 = vmatprep.subr.mxu0 0.0
    %181 = vmatpush1.msra.mxu0 0.0
    %182 = vmatprep.subr.mxu0 0.0
    %183 = vmatpush1.msra.mxu0 0.0
    %184 = vmatprep.subr.mxu0 0.0
    %185 = vmatpush1.msra.mxu0 0.0
    %186 = vmatprep.subr.mxu0 0.0
    %187 = vmatpush1.msra.mxu0 0.0
    %188 = vmatprep.subr.mxu0 0.0
    %189 = vmatpush1.msra.mxu0 0.0
    %190 = vmatprep.subr.mxu0 0.0
    %191 = vmatpush1.msra.mxu0 0.0
    %192 = vmatprep.subr.mxu0 0.0
    %193 = vmatpush1.msra.mxu0 0.0
    %194 = vmatprep.subr.mxu0 0.0
    %195 = vmatpush1.msra.mxu0 %v164
    %196 = vmatprep.subr.mxu0 0.0
    %197 = vmatpush1.msra.mxu0 %v163
    %198 = vmatprep.subr.mxu0 0.0
    %199 = vmatpush1.msra.mxu0 %v162
    %200 = vmatprep.subr.mxu0 0.0
    %201 = vmatpush1.msra.mxu0 %v161
    %202 = vmatprep.subr.mxu0 0.0
    %203 = vmatpush2.msra.mxu0 0.0
    %204 = vmatprep.subr.mxu0 0.0
    %205 = vmatpush2.msra.mxu0 0.0
    %206 = vmatprep.subr.mxu0 0.0
    %207 = vmatpush2.msra.mxu0 0.0
    %208 = vmatprep.subr.mxu0 0.0
    %209 = vmatpush2.msra.mxu0 0.0
    %210 = vmatprep.subr.mxu0 0.0
    %211 = vmatpush2.msra.mxu0 0.0
    %212 = vmatprep.subr.mxu0 0.0
    %213 = vmatpush2.msra.mxu0 0.0
    %214 = vmatprep.subr.mxu0 0.0
    %215 = vmatpush2.msra.mxu0 0.0
    %216 = vmatprep.subr.mxu0 0.0
    %217 = vmatpush2.msra.mxu0 0.0
    %218 = vmatprep.subr.mxu0 0.0
    %219 = vmatpush2.msra.mxu0 0.0
    %220 = vmatprep.subr.mxu0 0.0
    %221 = vmatpush2.msra.mxu0 0.0
    %222 = vmatprep.subr.mxu0 0.0
    %223 = vmatpush2.msra.mxu0 0.0
    %224 = vmatprep.subr.mxu0 0.0
    %225 = vmatpush2.msra.mxu0 0.0
    %226 = vmatprep.subr.mxu0 0.0
    %227 = vmatpush2.msra.mxu0 0.0
    %228 = vmatprep.subr.mxu0 0.0
    %229 = vmatpush2.msra.mxu0 0.0
    %230 = vmatprep.subr.mxu0 0.0
    %231 = vmatpush2.msra.mxu0 0.0
    %232 = vmatprep.subr.mxu0 0.0
    %233 = vmatpush2.msra.mxu0 0.0
    %234 = vmatprep.mubr.f32.mxu0 0.0
    %235 = vmatmul.mubr.f32.gmra.mxu0 %v168
    %v236 = vpop.f32.mrf.mxu0
    %v237 = vadd.f32 0.0, %v236
    %v238 = vpop.f32.mrf.mxu0
    %239 = vdwg.mxu0
    %v241 = vrot.slane %v237, 1
    %v244 = vadd.f32 %v153, %v237
    %v245 = vadd.f32 %v158, %v241
    %v246 = vmul.f32 %v244, 0.5
    %v247 = vmul.f32 %v245, 0.5
    %v248 = vtanh.pop %v246
    %v249 = vtanh.pop %v247
    %v250 = vadd.f32 %v248, 1.0
    %v251 = vadd.f32 %v249, 1.0
    %v252 = vmul.f32 %v250, 0.5
    %v253 = vmul.f32 %v251, 0.5
    %v254 = vtanh.pop %v244
    %v255 = vtanh.pop %v245
    %v257 = vrot.slane %v166, 1
    %258 = vrot.lane.b32.xlu0 %v166, 32
    %v259 = vpop.permute.xlu0 %258
    %260 = vrot.lane.b32.xlu0 %v257, 32
    %v261 = vpop.permute.xlu0 %260
    %v264 = vmul.f32 %v252, %v259
    %v265 = vmul.f32 %v253, %v261
    %268 = vrot.lane.b32.xlu0 %v254, 64
    %v269 = vpop.permute.xlu0 %268
    %270 = vrot.lane.b32.xlu0 %v255, 64
    %v271 = vpop.permute.xlu0 %270
    %v274 = vmul.f32 %v252, %v269
    %v275 = vmul.f32 %v253, %v271
    %278 = vrot.lane.b32.xlu0 %v274, 32
    %v279 = vpop.permute.xlu0 %278
    %280 = vrot.lane.b32.xlu0 %v275, 32
    %v281 = vpop.permute.xlu0 %280
    %v284 = vadd.f32 %v264, %v279
    %v285 = vadd.f32 %v265, %v281
    %v286 = vtanh.pop %v284
    %v287 = vtanh.pop %v285
    %290 = vrot.lane.b32.xlu0 %v286, 64
    %v291 = vpop.permute.xlu0 %290
    %292 = vrot.lane.b32.xlu0 %v287, 64
    %v293 = vpop.permute.xlu0 %292
    %v296 = vmul.f32 %v252, %v291
    %v297 = vmul.f32 %v253, %v293
    %300 = vrot.lane.b32.xlu0 %v296, 32
    %v301 = vpop.permute.xlu0 %300
    %302 = vrot.lane.b32.xlu0 %v297, 32
    %v303 = vpop.permute.xlu0 %302
    %vm306 = vcmask 253952
    %307 = vst.msk [vmem:[#allocation10] sm:$0x1] %vm306, %v301
    %308 = vst.msk [vmem:[#allocation10 + $0x8] sm:$0x1] %vm306, %v303
    %v309 = vrot.slane %v297, 7
    %vm310 = vcmask 1041409
    %v311 = vsel %vm310, %v309, %v296
    %312 = vrot.lane.b32.xlu0 %v311, 32
    %v313 = vpop.permute.xlu0 %312
    %v314 = vsel %vm79, %v313, 0
    %316 = vmatprep.subr.mxu0 0.0
    %317 = vmatpush1.msra.mxu0 0.0
    %318 = vmatprep.subr.mxu0 0.0
    %319 = vmatpush1.msra.mxu0 0.0
    %320 = vmatprep.subr.mxu0 0.0
    %321 = vmatpush1.msra.mxu0 0.0
    %322 = vmatprep.subr.mxu0 0.0
    %323 = vmatpush1.msra.mxu0 0.0
    %324 = vmatprep.subr.mxu0 0.0
    %325 = vmatpush1.msra.mxu0 0.0
    %326 = vmatprep.subr.mxu0 0.0
    %327 = vmatpush1.msra.mxu0 0.0
    %328 = vmatprep.subr.mxu0 0.0
    %329 = vmatpush1.msra.mxu0 0.0
    %330 = vmatprep.subr.mxu0 0.0
    %331 = vmatpush1.msra.mxu0 0.0
    %332 = vmatprep.subr.mxu0 0.0
    %333 = vmatpush1.msra.mxu0 0.0
    %334 = vmatprep.subr.mxu0 0.0
    %335 = vmatpush1.msra.mxu0 0.0
    %336 = vmatprep.subr.mxu0 0.0
    %337 = vmatpush1.msra.mxu0 0.0
    %338 = vmatprep.subr.mxu0 0.0
    %339 = vmatpush1.msra.mxu0 0.0
    %340 = vmatprep.subr.mxu0 0.0
    %341 = vmatpush1.msra.mxu0 %v164
    %342 = vmatprep.subr.mxu0 0.0
    %343 = vmatpush1.msra.mxu0 %v163
    %344 = vmatprep.subr.mxu0 0.0
    %345 = vmatpush1.msra.mxu0 %v162
    %346 = vmatprep.subr.mxu0 0.0
    %347 = vmatpush1.msra.mxu0 %v161
    %348 = vmatprep.subr.mxu0 0.0
    %349 = vmatpush2.msra.mxu0 0.0
    %350 = vmatprep.subr.mxu0 0.0
    %351 = vmatpush2.msra.mxu0 0.0
    %352 = vmatprep.subr.mxu0 0.0
    %353 = vmatpush2.msra.mxu0 0.0
    %354 = vmatprep.subr.mxu0 0.0
    %355 = vmatpush2.msra.mxu0 0.0
    %356 = vmatprep.subr.mxu0 0.0
    %357 = vmatpush2.msra.mxu0 0.0
    %358 = vmatprep.subr.mxu0 0.0
    %359 = vmatpush2.msra.mxu0 0.0
    %360 = vmatprep.subr.mxu0 0.0
    %361 = vmatpush2.msra.mxu0 0.0
    %362 = vmatprep.subr.mxu0 0.0
    %363 = vmatpush2.msra.mxu0 0.0
    %364 = vmatprep.subr.mxu0 0.0
    %365 = vmatpush2.msra.mxu0 0.0
    %366 = vmatprep.subr.mxu0 0.0
    %367 = vmatpush2.msra.mxu0 0.0
    %368 = vmatprep.subr.mxu0 0.0
    %369 = vmatpush2.msra.mxu0 0.0
    %370 = vmatprep.subr.mxu0 0.0
    %371 = vmatpush2.msra.mxu0 0.0
    %372 = vmatprep.subr.mxu0 0.0
    %373 = vmatpush2.msra.mxu0 0.0
    %374 = vmatprep.subr.mxu0 0.0
    %375 = vmatpush2.msra.mxu0 0.0
    %376 = vmatprep.subr.mxu0 0.0
    %377 = vmatpush2.msra.mxu0 0.0
    %378 = vmatprep.subr.mxu0 0.0
    %379 = vmatpush2.msra.mxu0 0.0
    %380 = vmatprep.mubr.f32.mxu0 0.0
    %381 = vmatmul.mubr.f32.gmra.mxu0 %v314
    %v382 = vpop.f32.mrf.mxu0
    %v383 = vadd.f32 0.0, %v382
    %v384 = vpop.f32.mrf.mxu0
    %385 = vdwg.mxu0
    %v387 = vrot.slane %v383, 7
    %v390 = vadd.f32 %v153, %v387
    %v391 = vadd.f32 %v158, %v383
    %v392 = vmul.f32 %v390, 0.5
    %v393 = vmul.f32 %v391, 0.5
    %v394 = vtanh.pop %v392
    %v395 = vtanh.pop %v393
    %v396 = vadd.f32 %v394, 1.0
    %v397 = vadd.f32 %v395, 1.0
    %v398 = vmul.f32 %v396, 0.5
    %v399 = vmul.f32 %v397, 0.5
    %v400 = vtanh.pop %v390
    %v401 = vtanh.pop %v391
    %v404 = vrot.slane %v284, 7
    %v405 = vrot.slane %v285, 7
    %v408 = vmul.f32 %v398, %v404
    %v409 = vmul.f32 %v399, %v405
    %412 = vrot.lane.b32.xlu0 %v400, 64
    %v413 = vpop.permute.xlu0 %412
    %414 = vrot.lane.b32.xlu0 %v401, 64
    %v415 = vpop.permute.xlu0 %414
    %v418 = vmul.f32 %v398, %v413
    %v419 = vmul.f32 %v399, %v415
    %422 = vrot.lane.b32.xlu0 %v418, 32
    %v423 = vpop.permute.xlu0 %422
    %424 = vrot.lane.b32.xlu0 %v419, 32
    %v425 = vpop.permute.xlu0 %424
    %v428 = vadd.f32 %v408, %v423
    %v429 = vadd.f32 %v409, %v425
    %v430 = vtanh.pop %v428
    %v431 = vtanh.pop %v429
    %434 = vrot.lane.b32.xlu0 %v430, 64
    %v435 = vpop.permute.xlu0 %434
    %436 = vrot.lane.b32.xlu0 %v431, 64
    %v437 = vpop.permute.xlu0 %436
    %v440 = vmul.f32 %v398, %v435
    %v441 = vmul.f32 %v399, %v437
    %444 = vrot.lane.b32.xlu0 %v440, 32
    %v445 = vpop.permute.xlu0 %444
    %446 = vrot.lane.b32.xlu0 %v441, 32
    %v447 = vpop.permute.xlu0 %446
    %vm450 = vcmask 254977
    %451 = vst.msk [vmem:[#allocation10] sm:$0x2] %vm450, %v445
    %452 = vst.msk [vmem:[#allocation10 + $0x8] sm:$0x2] %vm450, %v447
    %v453 = vrot.slane %v440, 1
    %v454 = vsel %vm310, %v441, %v453
    %455 = vrot.lane.b32.xlu0 %v454, 32
    %v456 = vpop.permute.xlu0 %455
    %v457 = vsel %vm79, %v456, 0
    %459 = vmatprep.subr.mxu0 0.0
    %460 = vmatpush1.msra.mxu0 0.0
    %461 = vmatprep.subr.mxu0 0.0
    %462 = vmatpush1.msra.mxu0 0.0
    %463 = vmatprep.subr.mxu0 0.0
    %464 = vmatpush1.msra.mxu0 0.0
    %465 = vmatprep.subr.mxu0 0.0
    %466 = vmatpush1.msra.mxu0 0.0
    %467 = vmatprep.subr.mxu0 0.0
    %468 = vmatpush1.msra.mxu0 0.0
    %469 = vmatprep.subr.mxu0 0.0
    %470 = vmatpush1.msra.mxu0 0.0
    %471 = vmatprep.subr.mxu0 0.0
    %472 = vmatpush1.msra.mxu0 0.0
    %473 = vmatprep.subr.mxu0 0.0
    %474 = vmatpush1.msra.mxu0 0.0
    %475 = vmatprep.subr.mxu0 0.0
    %476 = vmatpush1.msra.mxu0 0.0
    %477 = vmatprep.subr.mxu0 0.0
    %478 = vmatpush1.msra.mxu0 0.0
    %479 = vmatprep.subr.mxu0 0.0
    %480 = vmatpush1.msra.mxu0 0.0
    %481 = vmatprep.subr.mxu0 0.0
    %482 = vmatpush1.msra.mxu0 0.0
    %483 = vmatprep.subr.mxu0 0.0
    %484 = vmatpush1.msra.mxu0 %v164
    %485 = vmatprep.subr.mxu0 0.0
    %486 = vmatpush1.msra.mxu0 %v163
    %487 = vmatprep.subr.mxu0 0.0
    %488 = vmatpush1.msra.mxu0 %v162
    %489 = vmatprep.subr.mxu0 0.0
    %490 = vmatpush1.msra.mxu0 %v161
    %491 = vmatprep.subr.mxu0 0.0
    %492 = vmatpush2.msra.mxu0 0.0
    %493 = vmatprep.subr.mxu0 0.0
    %494 = vmatpush2.msra.mxu0 0.0
    %495 = vmatprep.subr.mxu0 0.0
    %496 = vmatpush2.msra.mxu0 0.0
    %497 = vmatprep.subr.mxu0 0.0
    %498 = vmatpush2.msra.mxu0 0.0
    %499 = vmatprep.subr.mxu0 0.0
    %500 = vmatpush2.msra.mxu0 0.0
    %501 = vmatprep.subr.mxu0 0.0
    %502 = vmatpush2.msra.mxu0 0.0
    %503 = vmatprep.subr.mxu0 0.0
    %504 = vmatpush2.msra.mxu0 0.0
    %505 = vmatprep.subr.mxu0 0.0
    %506 = vmatpush2.msra.mxu0 0.0
    %507 = vmatprep.subr.mxu0 0.0
    %508 = vmatpush2.msra.mxu0 0.0
    %509 = vmatprep.subr.mxu0 0.0
    %510 = vmatpush2.msra.mxu0 0.0
    %511 = vmatprep.subr.mxu0 0.0
    %512 = vmatpush2.msra.mxu0 0.0
    %513 = vmatprep.subr.mxu0 0.0
    %514 = vmatpush2.msra.mxu0 0.0
    %515 = vmatprep.subr.mxu0 0.0
    %516 = vmatpush2.msra.mxu0 0.0
    %517 = vmatprep.subr.mxu0 0.0
    %518 = vmatpush2.msra.mxu0 0.0
    %519 = vmatprep.subr.mxu0 0.0
    %520 = vmatpush2.msra.mxu0 0.0
    %521 = vmatprep.subr.mxu0 0.0
    %522 = vmatpush2.msra.mxu0 0.0
    %523 = vmatprep.mubr.f32.mxu0 0.0
    %524 = vmatmul.mubr.f32.gmra.mxu0 %v457
    %v525 = vpop.f32.mrf.mxu0
    %v526 = vadd.f32 0.0, %v525
    %v527 = vpop.f32.mrf.mxu0
    %528 = vdwg.mxu0
    %v530 = vrot.slane %v526, 6
    %v531 = vrot.slane %v526, 7
    %v534 = vadd.f32 %v153, %v530
    %v535 = vadd.f32 %v158, %v531
    %v536 = vmul.f32 %v534, 0.5
    %v537 = vmul.f32 %v535, 0.5
    %v538 = vtanh.pop %v536
    %v539 = vtanh.pop %v537
    %v540 = vadd.f32 %v538, 1.0
    %v541 = vadd.f32 %v539, 1.0
    %v542 = vmul.f32 %v540, 0.5
    %v543 = vmul.f32 %v541, 0.5
    %v544 = vtanh.pop %v534
    %v545 = vtanh.pop %v535
    %v548 = vrot.slane %v428, 7
    %v549 = vrot.slane %v429, 7
    %v552 = vmul.f32 %v542, %v548
    %v553 = vmul.f32 %v543, %v549
    %556 = vrot.lane.b32.xlu0 %v544, 64
    %v557 = vpop.permute.xlu0 %556
    %558 = vrot.lane.b32.xlu0 %v545, 64
    %v559 = vpop.permute.xlu0 %558
    %v562 = vmul.f32 %v542, %v557
    %v563 = vmul.f32 %v543, %v559
    %566 = vrot.lane.b32.xlu0 %v562, 32
    %v567 = vpop.permute.xlu0 %566
    %568 = vrot.lane.b32.xlu0 %v563, 32
    %v569 = vpop.permute.xlu0 %568
    %v572 = vadd.f32 %v552, %v567
    %v573 = vadd.f32 %v553, %v569
    %v574 = vtanh.pop %v572
    %v575 = vtanh.pop %v573
    %578 = vrot.lane.b32.xlu0 %v574, 64
    %v579 = vpop.permute.xlu0 %578
    %580 = vrot.lane.b32.xlu0 %v575, 64
    %v581 = vpop.permute.xlu0 %580
    %v584 = vmul.f32 %v542, %v579
    %v585 = vmul.f32 %v543, %v581
    %588 = vrot.lane.b32.xlu0 %v584, 32
    %v589 = vpop.permute.xlu0 %588
    %590 = vrot.lane.b32.xlu0 %v585, 32
    %v591 = vpop.permute.xlu0 %590
    %vm594 = vcmask 256002
    %595 = vst.msk [vmem:[#allocation10] sm:$0x4] %vm594, %v589
    %596 = vst.msk [vmem:[#allocation10 + $0x8] sm:$0x4] %vm594, %v591
    %v597 = vrot.slane %v584, 2
    %v598 = vrot.slane %v585, 1
    %v599 = vsel %vm310, %v598, %v597
    %600 = vrot.lane.b32.xlu0 %v599, 32
    %v601 = vpop.permute.xlu0 %600
    %v602 = vsel %vm79, %v601, 0
    %604 = vmatprep.subr.mxu0 0.0
    %605 = vmatpush1.msra.mxu0 0.0
    %606 = vmatprep.subr.mxu0 0.0
    %607 = vmatpush1.msra.mxu0 0.0
    %608 = vmatprep.subr.mxu0 0.0
    %609 = vmatpush1.msra.mxu0 0.0
    %610 = vmatprep.subr.mxu0 0.0
    %611 = vmatpush1.msra.mxu0 0.0
    %612 = vmatprep.subr.mxu0 0.0
    %613 = vmatpush1.msra.mxu0 0.0
    %614 = vmatprep.subr.mxu0 0.0
    %615 = vmatpush1.msra.mxu0 0.0
    %616 = vmatprep.subr.mxu0 0.0
    %617 = vmatpush1.msra.mxu0 0.0
    %618 = vmatprep.subr.mxu0 0.0
    %619 = vmatpush1.msra.mxu0 0.0
    %620 = vmatprep.subr.mxu0 0.0
    %621 = vmatpush1.msra.mxu0 0.0
    %622 = vmatprep.subr.mxu0 0.0
    %623 = vmatpush1.msra.mxu0 0.0
    %624 = vmatprep.subr.mxu0 0.0
    %625 = vmatpush1.msra.mxu0 0.0
    %626 = vmatprep.subr.mxu0 0.0
    %627 = vmatpush1.msra.mxu0 0.0
    %628 = vmatprep.subr.mxu0 0.0
    %629 = vmatpush1.msra.mxu0 %v164
    %630 = vmatprep.subr.mxu0 0.0
    %631 = vmatpush1.msra.mxu0 %v163
    %632 = vmatprep.subr.mxu0 0.0
    %633 = vmatpush1.msra.mxu0 %v162
    %634 = vmatprep.subr.mxu0 0.0
    %635 = vmatpush1.msra.mxu0 %v161
    %636 = vmatprep.subr.mxu0 0.0
    %637 = vmatpush2.msra.mxu0 0.0
    %638 = vmatprep.subr.mxu0 0.0
    %639 = vmatpush2.msra.mxu0 0.0
    %640 = vmatprep.subr.mxu0 0.0
    %641 = vmatpush2.msra.mxu0 0.0
    %642 = vmatprep.subr.mxu0 0.0
    %643 = vmatpush2.msra.mxu0 0.0
    %644 = vmatprep.subr.mxu0 0.0
    %645 = vmatpush2.msra.mxu0 0.0
    %646 = vmatprep.subr.mxu0 0.0
    %647 = vmatpush2.msra.mxu0 0.0
    %648 = vmatprep.subr.mxu0 0.0
    %649 = vmatpush2.msra.mxu0 0.0
    %650 = vmatprep.subr.mxu0 0.0
    %651 = vmatpush2.msra.mxu0 0.0
    %652 = vmatprep.subr.mxu0 0.0
    %653 = vmatpush2.msra.mxu0 0.0
    %654 = vmatprep.subr.mxu0 0.0
    %655 = vmatpush2.msra.mxu0 0.0
    %656 = vmatprep.subr.mxu0 0.0
    %657 = vmatpush2.msra.mxu0 0.0
    %658 = vmatprep.subr.mxu0 0.0
    %659 = vmatpush2.msra.mxu0 0.0
    %660 = vmatprep.subr.mxu0 0.0
    %661 = vmatpush2.msra.mxu0 0.0
    %662 = vmatprep.subr.mxu0 0.0
    %663 = vmatpush2.msra.mxu0 0.0
    %664 = vmatprep.subr.mxu0 0.0
    %665 = vmatpush2.msra.mxu0 0.0
    %666 = vmatprep.subr.mxu0 0.0
    %667 = vmatpush2.msra.mxu0 0.0
    %668 = vmatprep.mubr.f32.mxu0 0.0
    %669 = vmatmul.mubr.f32.gmra.mxu0 %v602
    %v670 = vpop.f32.mrf.mxu0
    %v671 = vadd.f32 0.0, %v670
    %v672 = vpop.f32.mrf.mxu0
    %673 = vdwg.mxu0
    %v675 = vrot.slane %v671, 5
    %v676 = vrot.slane %v671, 6
    %v679 = vadd.f32 %v153, %v675
    %v680 = vadd.f32 %v158, %v676
    %v681 = vmul.f32 %v679, 0.5
    %v682 = vmul.f32 %v680, 0.5
    %v683 = vtanh.pop %v681
    %v684 = vtanh.pop %v682
    %v685 = vadd.f32 %v683, 1.0
    %v686 = vadd.f32 %v684, 1.0
    %v687 = vmul.f32 %v685, 0.5
    %v688 = vmul.f32 %v686, 0.5
    %v689 = vtanh.pop %v679
    %v690 = vtanh.pop %v680
    %v693 = vrot.slane %v572, 7
    %v694 = vrot.slane %v573, 7
    %v697 = vmul.f32 %v687, %v693
    %v698 = vmul.f32 %v688, %v694
    %701 = vrot.lane.b32.xlu0 %v689, 64
    %v702 = vpop.permute.xlu0 %701
    %703 = vrot.lane.b32.xlu0 %v690, 64
    %v704 = vpop.permute.xlu0 %703
    %v707 = vmul.f32 %v687, %v702
    %v708 = vmul.f32 %v688, %v704
    %711 = vrot.lane.b32.xlu0 %v707, 32
    %v712 = vpop.permute.xlu0 %711
    %713 = vrot.lane.b32.xlu0 %v708, 32
    %v714 = vpop.permute.xlu0 %713
    %v717 = vadd.f32 %v697, %v712
    %v718 = vadd.f32 %v698, %v714
    %v719 = vtanh.pop %v717
    %v720 = vtanh.pop %v718
    %723 = vrot.lane.b32.xlu0 %v719, 64
    %v724 = vpop.permute.xlu0 %723
    %725 = vrot.lane.b32.xlu0 %v720, 64
    %v726 = vpop.permute.xlu0 %725
    %v729 = vmul.f32 %v687, %v724
    %v730 = vmul.f32 %v688, %v726
    %733 = vrot.lane.b32.xlu0 %v729, 32
    %v734 = vpop.permute.xlu0 %733
    %735 = vrot.lane.b32.xlu0 %v730, 32
    %v736 = vpop.permute.xlu0 %735
    %vm739 = vcmask 257027
    %740 = vst.msk [vmem:[#allocation10] sm:$0x8] %vm739, %v734
    %741 = vst.msk [vmem:[#allocation10 + $0x8] sm:$0x8] %vm739, %v736
    %v742 = vrot.slane %v729, 3
    %v743 = vrot.slane %v730, 2
    %v744 = vsel %vm310, %v743, %v742
    %745 = vrot.lane.b32.xlu0 %v744, 32
    %v746 = vpop.permute.xlu0 %745
    %v747 = vsel %vm79, %v746, 0
    %749 = vmatprep.subr.mxu0 0.0
    %750 = vmatpush1.msra.mxu0 0.0
    %751 = vmatprep.subr.mxu0 0.0
    %752 = vmatpush1.msra.mxu0 0.0
    %753 = vmatprep.subr.mxu0 0.0
    %754 = vmatpush1.msra.mxu0 0.0
    %755 = vmatprep.subr.mxu0 0.0
    %756 = vmatpush1.msra.mxu0 0.0
    %757 = vmatprep.subr.mxu0 0.0
    %758 = vmatpush1.msra.mxu0 0.0
    %759 = vmatprep.subr.mxu0 0.0
    %760 = vmatpush1.msra.mxu0 0.0
    %761 = vmatprep.subr.mxu0 0.0
    %762 = vmatpush1.msra.mxu0 0.0
    %763 = vmatprep.subr.mxu0 0.0
    %764 = vmatpush1.msra.mxu0 0.0
    %765 = vmatprep.subr.mxu0 0.0
    %766 = vmatpush1.msra.mxu0 0.0
    %767 = vmatprep.subr.mxu0 0.0
    %768 = vmatpush1.msra.mxu0 0.0
    %769 = vmatprep.subr.mxu0 0.0
    %770 = vmatpush1.msra.mxu0 0.0
    %771 = vmatprep.subr.mxu0 0.0
    %772 = vmatpush1.msra.mxu0 0.0
    %773 = vmatprep.subr.mxu0 0.0
    %774 = vmatpush1.msra.mxu0 %v164
    %775 = vmatprep.subr.mxu0 0.0
    %776 = vmatpush1.msra.mxu0 %v163
    %777 = vmatprep.subr.mxu0 0.0
    %778 = vmatpush1.msra.mxu0 %v162
    %779 = vmatprep.subr.mxu0 0.0
    %780 = vmatpush1.msra.mxu0 %v161
    %781 = vmatprep.subr.mxu0 0.0
    %782 = vmatpush2.msra.mxu0 0.0
    %783 = vmatprep.subr.mxu0 0.0
    %784 = vmatpush2.msra.mxu0 0.0
    %785 = vmatprep.subr.mxu0 0.0
    %786 = vmatpush2.msra.mxu0 0.0
    %787 = vmatprep.subr.mxu0 0.0
    %788 = vmatpush2.msra.mxu0 0.0
    %789 = vmatprep.subr.mxu0 0.0
    %790 = vmatpush2.msra.mxu0 0.0
    %791 = vmatprep.subr.mxu0 0.0
    %792 = vmatpush2.msra.mxu0 0.0
    %793 = vmatprep.subr.mxu0 0.0
    %794 = vmatpush2.msra.mxu0 0.0
    %795 = vmatprep.subr.mxu0 0.0
    %796 = vmatpush2.msra.mxu0 0.0
    %797 = vmatprep.subr.mxu0 0.0
    %798 = vmatpush2.msra.mxu0 0.0
    %799 = vmatprep.subr.mxu0 0.0
    %800 = vmatpush2.msra.mxu0 0.0
    %801 = vmatprep.subr.mxu0 0.0
    %802 = vmatpush2.msra.mxu0 0.0
    %803 = vmatprep.subr.mxu0 0.0
    %804 = vmatpush2.msra.mxu0 0.0
    %805 = vmatprep.subr.mxu0 0.0
    %806 = vmatpush2.msra.mxu0 0.0
    %807 = vmatprep.subr.mxu0 0.0
    %808 = vmatpush2.msra.mxu0 0.0
    %809 = vmatprep.subr.mxu0 0.0
    %810 = vmatpush2.msra.mxu0 0.0
    %811 = vmatprep.subr.mxu0 0.0
    %812 = vmatpush2.msra.mxu0 0.0
    %813 = vmatprep.mubr.f32.mxu0 0.0
    %814 = vmatmul.mubr.f32.gmra.mxu0 %v747
    %v815 = vpop.f32.mrf.mxu0
    %v816 = vadd.f32 0.0, %v815
    %v817 = vpop.f32.mrf.mxu0
    %818 = vdwg.mxu0
    %v820 = vrot.slane %v816, 4
    %v821 = vrot.slane %v816, 5
    %v824 = vadd.f32 %v153, %v820
    %v825 = vadd.f32 %v158, %v821
    %v826 = vmul.f32 %v824, 0.5
    %v827 = vmul.f32 %v825, 0.5
    %v828 = vtanh.pop %v826
    %v829 = vtanh.pop %v827
    %v830 = vadd.f32 %v828, 1.0
    %v831 = vadd.f32 %v829, 1.0
    %v832 = vmul.f32 %v830, 0.5
    %v833 = vmul.f32 %v831, 0.5
    %v834 = vtanh.pop %v824
    %v835 = vtanh.pop %v825
    %v838 = vrot.slane %v717, 7
    %v839 = vrot.slane %v718, 7
    %v842 = vmul.f32 %v832, %v838
    %v843 = vmul.f32 %v833, %v839
    %846 = vrot.lane.b32.xlu0 %v834, 64
    %v847 = vpop.permute.xlu0 %846
    %848 = vrot.lane.b32.xlu0 %v835, 64
    %v849 = vpop.permute.xlu0 %848
    %v852 = vmul.f32 %v832, %v847
    %v853 = vmul.f32 %v833, %v849
    %856 = vrot.lane.b32.xlu0 %v852, 32
    %v857 = vpop.permute.xlu0 %856
    %858 = vrot.lane.b32.xlu0 %v853, 32
    %v859 = vpop.permute.xlu0 %858
    %v862 = vadd.f32 %v842, %v857
    %v863 = vadd.f32 %v843, %v859
    %v864 = vtanh.pop %v862
    %v865 = vtanh.pop %v863
    %868 = vrot.lane.b32.xlu0 %v864, 64
    %v869 = vpop.permute.xlu0 %868
    %870 = vrot.lane.b32.xlu0 %v865, 64
    %v871 = vpop.permute.xlu0 %870
    %v874 = vmul.f32 %v832, %v869
    %v875 = vmul.f32 %v833, %v871
    %878 = vrot.lane.b32.xlu0 %v874, 32
    %v879 = vpop.permute.xlu0 %878
    %880 = vrot.lane.b32.xlu0 %v875, 32
    %v881 = vpop.permute.xlu0 %880
    %vm884 = vcmask 258052
    %885 = vst.msk [vmem:[#allocation10] sm:$0x10] %vm884, %v879
    %886 = vst.msk [vmem:[#allocation10 + $0x8] sm:$0x10] %vm884, %v881
    %v887 = vrot.slane %v874, 4
    %v888 = vrot.slane %v875, 3
    %v889 = vsel %vm310, %v888, %v887
    %890 = vrot.lane.b32.xlu0 %v889, 32
    %v891 = vpop.permute.xlu0 %890
    %v892 = vsel %vm79, %v891, 0
    %894 = vmatprep.subr.mxu0 0.0
    %895 = vmatpush1.msra.mxu0 0.0
    %896 = vmatprep.subr.mxu0 0.0
    %897 = vmatpush1.msra.mxu0 0.0
    %898 = vmatprep.subr.mxu0 0.0
    %899 = vmatpush1.msra.mxu0 0.0
    %900 = vmatprep.subr.mxu0 0.0
    %901 = vmatpush1.msra.mxu0 0.0
    %902 = vmatprep.subr.mxu0 0.0
    %903 = vmatpush1.msra.mxu0 0.0
    %904 = vmatprep.subr.mxu0 0.0
    %905 = vmatpush1.msra.mxu0 0.0
    %906 = vmatprep.subr.mxu0 0.0
    %907 = vmatpush1.msra.mxu0 0.0
    %908 = vmatprep.subr.mxu0 0.0
    %909 = vmatpush1.msra.mxu0 0.0
    %910 = vmatprep.subr.mxu0 0.0
    %911 = vmatpush1.msra.mxu0 0.0
    %912 = vmatprep.subr.mxu0 0.0
    %913 = vmatpush1.msra.mxu0 0.0
    %914 = vmatprep.subr.mxu0 0.0
    %915 = vmatpush1.msra.mxu0 0.0
    %916 = vmatprep.subr.mxu0 0.0
    %917 = vmatpush1.msra.mxu0 0.0
    %918 = vmatprep.subr.mxu0 0.0
    %919 = vmatpush1.msra.mxu0 %v164
    %920 = vmatprep.subr.mxu0 0.0
    %921 = vmatpush1.msra.mxu0 %v163
    %922 = vmatprep.subr.mxu0 0.0
    %923 = vmatpush1.msra.mxu0 %v162
    %924 = vmatprep.subr.mxu0 0.0
    %925 = vmatpush1.msra.mxu0 %v161
    %926 = vmatprep.subr.mxu0 0.0
    %927 = vmatpush2.msra.mxu0 0.0
    %928 = vmatprep.subr.mxu0 0.0
    %929 = vmatpush2.msra.mxu0 0.0
    %930 = vmatprep.subr.mxu0 0.0
    %931 = vmatpush2.msra.mxu0 0.0
    %932 = vmatprep.subr.mxu0 0.0
    %933 = vmatpush2.msra.mxu0 0.0
    %934 = vmatprep.subr.mxu0 0.0
    %935 = vmatpush2.msra.mxu0 0.0
    %936 = vmatprep.subr.mxu0 0.0
    %937 = vmatpush2.msra.mxu0 0.0
    %938 = vmatprep.subr.mxu0 0.0
    %939 = vmatpush2.msra.mxu0 0.0
    %940 = vmatprep.subr.mxu0 0.0
    %941 = vmatpush2.msra.mxu0 0.0
    %942 = vmatprep.subr.mxu0 0.0
    %943 = vmatpush2.msra.mxu0 0.0
    %944 = vmatprep.subr.mxu0 0.0
    %945 = vmatpush2.msra.mxu0 0.0
    %946 = vmatprep.subr.mxu0 0.0
    %947 = vmatpush2.msra.mxu0 0.0
    %948 = vmatprep.subr.mxu0 0.0
    %949 = vmatpush2.msra.mxu0 0.0
    %950 = vmatprep.subr.mxu0 0.0
    %951 = vmatpush2.msra.mxu0 0.0
    %952 = vmatprep.subr.mxu0 0.0
    %953 = vmatpush2.msra.mxu0 0.0
    %954 = vmatprep.subr.mxu0 0.0
    %955 = vmatpush2.msra.mxu0 0.0
    %956 = vmatprep.subr.mxu0 0.0
    %957 = vmatpush2.msra.mxu0 0.0
    %958 = vmatprep.mubr.f32.mxu0 0.0
    %959 = vmatmul.mubr.f32.gmra.mxu0 %v892
    %v960 = vpop.f32.mrf.mxu0
    %v961 = vadd.f32 0.0, %v960
    %v962 = vpop.f32.mrf.mxu0
    %963 = vdwg.mxu0
    %v965 = vrot.slane %v961, 3
    %v966 = vrot.slane %v961, 4
    %v969 = vadd.f32 %v153, %v965
    %v970 = vadd.f32 %v158, %v966
    %v971 = vmul.f32 %v969, 0.5
    %v972 = vmul.f32 %v970, 0.5
    %v973 = vtanh.pop %v971
    %v974 = vtanh.pop %v972
    %v975 = vadd.f32 %v973, 1.0
    %v976 = vadd.f32 %v974, 1.0
    %v977 = vmul.f32 %v975, 0.5
    %v978 = vmul.f32 %v976, 0.5
    %v979 = vtanh.pop %v969
    %v980 = vtanh.pop %v970
    %v983 = vrot.slane %v862, 7
    %v984 = vrot.slane %v863, 7
    %v987 = vmul.f32 %v977, %v983
    %v988 = vmul.f32 %v978, %v984
    %991 = vrot.lane.b32.xlu0 %v979, 64
    %v992 = vpop.permute.xlu0 %991
    %993 = vrot.lane.b32.xlu0 %v980, 64
    %v994 = vpop.permute.xlu0 %993
    %v997 = vmul.f32 %v977, %v992
    %v998 = vmul.f32 %v978, %v994
    %1001 = vrot.lane.b32.xlu0 %v997, 32
    %v1002 = vpop.permute.xlu0 %1001
    %1003 = vrot.lane.b32.xlu0 %v998, 32
    %v1004 = vpop.permute.xlu0 %1003
    %v1007 = vadd.f32 %v987, %v1002
    %v1008 = vadd.f32 %v988, %v1004
    %v1009 = vtanh.pop %v1007
    %v1010 = vtanh.pop %v1008
    %1013 = vrot.lane.b32.xlu0 %v1009, 64
    %v1014 = vpop.permute.xlu0 %1013
    %1015 = vrot.lane.b32.xlu0 %v1010, 64
    %v1016 = vpop.permute.xlu0 %1015
    %v1019 = vmul.f32 %v977, %v1014
    %v1020 = vmul.f32 %v978, %v1016
    %1023 = vrot.lane.b32.xlu0 %v1019, 32
    %v1024 = vpop.permute.xlu0 %1023
    %1025 = vrot.lane.b32.xlu0 %v1020, 32
    %v1026 = vpop.permute.xlu0 %1025
    %vm1029 = vcmask 259077
    %1030 = vst.msk [vmem:[#allocation10] sm:$0x20] %vm1029, %v1024
    %1031 = vst.msk [vmem:[#allocation10 + $0x8] sm:$0x20] %vm1029, %v1026
    %v1032 = vrot.slane %v1019, 5
    %v1033 = vrot.slane %v1020, 4
    %v1034 = vsel %vm310, %v1033, %v1032
    %1035 = vrot.lane.b32.xlu0 %v1034, 32
    %v1036 = vpop.permute.xlu0 %1035
    %v1037 = vsel %vm79, %v1036, 0
    %1039 = vmatprep.subr.mxu0 0.0
    %1040 = vmatpush1.msra.mxu0 0.0
    %1041 = vmatprep.subr.mxu0 0.0
    %1042 = vmatpush1.msra.mxu0 0.0
    %1043 = vmatprep.subr.mxu0 0.0
    %1044 = vmatpush1.msra.mxu0 0.0
    %1045 = vmatprep.subr.mxu0 0.0
    %1046 = vmatpush1.msra.mxu0 0.0
    %1047 = vmatprep.subr.mxu0 0.0
    %1048 = vmatpush1.msra.mxu0 0.0
    %1049 = vmatprep.subr.mxu0 0.0
    %1050 = vmatpush1.msra.mxu0 0.0
    %1051 = vmatprep.subr.mxu0 0.0
    %1052 = vmatpush1.msra.mxu0 0.0
    %1053 = vmatprep.subr.mxu0 0.0
    %1054 = vmatpush1.msra.mxu0 0.0
    %1055 = vmatprep.subr.mxu0 0.0
    %1056 = vmatpush1.msra.mxu0 0.0
    %1057 = vmatprep.subr.mxu0 0.0
    %1058 = vmatpush1.msra.mxu0 0.0
    %1059 = vmatprep.subr.mxu0 0.0
    %1060 = vmatpush1.msra.mxu0 0.0
    %1061 = vmatprep.subr.mxu0 0.0
    %1062 = vmatpush1.msra.mxu0 0.0
    %1063 = vmatprep.subr.mxu0 0.0
    %1064 = vmatpush1.msra.mxu0 %v164
    %1065 = vmatprep.subr.mxu0 0.0
    %1066 = vmatpush1.msra.mxu0 %v163
    %1067 = vmatprep.subr.mxu0 0.0
    %1068 = vmatpush1.msra.mxu0 %v162
    %1069 = vmatprep.subr.mxu0 0.0
    %1070 = vmatpush1.msra.mxu0 %v161
    %1071 = vmatprep.subr.mxu0 0.0
    %1072 = vmatpush2.msra.mxu0 0.0
    %1073 = vmatprep.subr.mxu0 0.0
    %1074 = vmatpush2.msra.mxu0 0.0
    %1075 = vmatprep.subr.mxu0 0.0
    %1076 = vmatpush2.msra.mxu0 0.0
    %1077 = vmatprep.subr.mxu0 0.0
    %1078 = vmatpush2.msra.mxu0 0.0
    %1079 = vmatprep.subr.mxu0 0.0
    %1080 = vmatpush2.msra.mxu0 0.0
    %1081 = vmatprep.subr.mxu0 0.0
    %1082 = vmatpush2.msra.mxu0 0.0
    %1083 = vmatprep.subr.mxu0 0.0
    %1084 = vmatpush2.msra.mxu0 0.0
    %1085 = vmatprep.subr.mxu0 0.0
    %1086 = vmatpush2.msra.mxu0 0.0
    %1087 = vmatprep.subr.mxu0 0.0
    %1088 = vmatpush2.msra.mxu0 0.0
    %1089 = vmatprep.subr.mxu0 0.0
    %1090 = vmatpush2.msra.mxu0 0.0
    %1091 = vmatprep.subr.mxu0 0.0
    %1092 = vmatpush2.msra.mxu0 0.0
    %1093 = vmatprep.subr.mxu0 0.0
    %1094 = vmatpush2.msra.mxu0 0.0
    %1095 = vmatprep.subr.mxu0 0.0
    %1096 = vmatpush2.msra.mxu0 0.0
    %1097 = vmatprep.subr.mxu0 0.0
    %1098 = vmatpush2.msra.mxu0 0.0
    %1099 = vmatprep.subr.mxu0 0.0
    %1100 = vmatpush2.msra.mxu0 0.0
    %1101 = vmatprep.subr.mxu0 0.0
    %1102 = vmatpush2.msra.mxu0 0.0
    %1103 = vmatprep.mubr.f32.mxu0 0.0
    %1104 = vmatmul.mubr.f32.gmra.mxu0 %v1037
    %v1105 = vpop.f32.mrf.mxu0
    %v1106 = vadd.f32 0.0, %v1105
    %v1107 = vpop.f32.mrf.mxu0
    %1108 = vdwg.mxu0
    %v1110 = vrot.slane %v1106, 2
    %v1111 = vrot.slane %v1106, 3
    %v1114 = vadd.f32 %v153, %v1110
    %v1115 = vadd.f32 %v158, %v1111
    %v1116 = vmul.f32 %v1114, 0.5
    %v1117 = vmul.f32 %v1115, 0.5
    %v1118 = vtanh.pop %v1116
    %v1119 = vtanh.pop %v1117
    %v1120 = vadd.f32 %v1118, 1.0
    %v1121 = vadd.f32 %v1119, 1.0
    %v1122 = vmul.f32 %v1120, 0.5
    %v1123 = vmul.f32 %v1121, 0.5
    %v1124 = vtanh.pop %v1114
    %v1125 = vtanh.pop %v1115
    %v1128 = vrot.slane %v1007, 7
    %v1129 = vrot.slane %v1008, 7
    %v1132 = vmul.f32 %v1122, %v1128
    %v1133 = vmul.f32 %v1123, %v1129
    %1136 = vrot.lane.b32.xlu0 %v1124, 64
    %v1137 = vpop.permute.xlu0 %1136
    %1138 = vrot.lane.b32.xlu0 %v1125, 64
    %v1139 = vpop.permute.xlu0 %1138
    %v1142 = vmul.f32 %v1122, %v1137
    %v1143 = vmul.f32 %v1123, %v1139
    %1146 = vrot.lane.b32.xlu0 %v1142, 32
    %v1147 = vpop.permute.xlu0 %1146
    %1148 = vrot.lane.b32.xlu0 %v1143, 32
    %v1149 = vpop.permute.xlu0 %1148
    %v1152 = vadd.f32 %v1132, %v1147
    %v1153 = vadd.f32 %v1133, %v1149
    %v1154 = vtanh.pop %v1152
    %v1155 = vtanh.pop %v1153
    %1158 = vrot.lane.b32.xlu0 %v1154, 64
    %v1159 = vpop.permute.xlu0 %1158
    %1160 = vrot.lane.b32.xlu0 %v1155, 64
    %v1161 = vpop.permute.xlu0 %1160
    %v1164 = vmul.f32 %v1122, %v1159
    %v1165 = vmul.f32 %v1123, %v1161
    %1168 = vrot.lane.b32.xlu0 %v1164, 32
    %v1169 = vpop.permute.xlu0 %1168
    %1170 = vrot.lane.b32.xlu0 %v1165, 32
    %v1171 = vpop.permute.xlu0 %1170
    %vm1174 = vcmask 260102
    %1175 = vst.msk [vmem:[#allocation10] sm:$0x40] %vm1174, %v1169
    %1176 = vst.msk [vmem:[#allocation10 + $0x8] sm:$0x40] %vm1174, %v1171
    %v1177 = vrot.slane %v1164, 6
    %v1178 = vrot.slane %v1165, 5
    %v1179 = vsel %vm310, %v1178, %v1177
    %1180 = vrot.lane.b32.xlu0 %v1179, 32
    %v1181 = vpop.permute.xlu0 %1180
    %v1182 = vsel %vm79, %v1181, 0
    %1184 = vmatprep.subr.mxu0 0.0
    %1185 = vmatpush1.msra.mxu0 0.0
    %1186 = vmatprep.subr.mxu0 0.0
    %1187 = vmatpush1.msra.mxu0 0.0
    %1188 = vmatprep.subr.mxu0 0.0
    %1189 = vmatpush1.msra.mxu0 0.0
    %1190 = vmatprep.subr.mxu0 0.0
    %1191 = vmatpush1.msra.mxu0 0.0
    %1192 = vmatprep.subr.mxu0 0.0
    %1193 = vmatpush1.msra.mxu0 0.0
    %1194 = vmatprep.subr.mxu0 0.0
    %1195 = vmatpush1.msra.mxu0 0.0
    %1196 = vmatprep.subr.mxu0 0.0
    %1197 = vmatpush1.msra.mxu0 0.0
    %1198 = vmatprep.subr.mxu0 0.0
    %1199 = vmatpush1.msra.mxu0 0.0
    %1200 = vmatprep.subr.mxu0 0.0
    %1201 = vmatpush1.msra.mxu0 0.0
    %1202 = vmatprep.subr.mxu0 0.0
    %1203 = vmatpush1.msra.mxu0 0.0
    %1204 = vmatprep.subr.mxu0 0.0
    %1205 = vmatpush1.msra.mxu0 0.0
    %1206 = vmatprep.subr.mxu0 0.0
    %1207 = vmatpush1.msra.mxu0 0.0
    %1208 = vmatprep.subr.mxu0 0.0
    %1209 = vmatpush1.msra.mxu0 %v164
    %1210 = vmatprep.subr.mxu0 0.0
    %1211 = vmatpush1.msra.mxu0 %v163
    %1212 = vmatprep.subr.mxu0 0.0
    %1213 = vmatpush1.msra.mxu0 %v162
    %1214 = vmatprep.subr.mxu0 0.0
    %1215 = vmatpush1.msra.mxu0 %v161
    %1216 = vmatprep.subr.mxu0 0.0
    %1217 = vmatpush2.msra.mxu0 0.0
    %1218 = vmatprep.subr.mxu0 0.0
    %1219 = vmatpush2.msra.mxu0 0.0
    %1220 = vmatprep.subr.mxu0 0.0
    %1221 = vmatpush2.msra.mxu0 0.0
    %1222 = vmatprep.subr.mxu0 0.0
    %1223 = vmatpush2.msra.mxu0 0.0
    %1224 = vmatprep.subr.mxu0 0.0
    %1225 = vmatpush2.msra.mxu0 0.0
    %1226 = vmatprep.subr.mxu0 0.0
    %1227 = vmatpush2.msra.mxu0 0.0
    %1228 = vmatprep.subr.mxu0 0.0
    %1229 = vmatpush2.msra.mxu0 0.0
    %1230 = vmatprep.subr.mxu0 0.0
    %1231 = vmatpush2.msra.mxu0 0.0
    %1232 = vmatprep.subr.mxu0 0.0
    %1233 = vmatpush2.msra.mxu0 0.0
    %1234 = vmatprep.subr.mxu0 0.0
    %1235 = vmatpush2.msra.mxu0 0.0
    %1236 = vmatprep.subr.mxu0 0.0
    %1237 = vmatpush2.msra.mxu0 0.0
    %1238 = vmatprep.subr.mxu0 0.0
    %1239 = vmatpush2.msra.mxu0 0.0
    %1240 = vmatprep.subr.mxu0 0.0
    %1241 = vmatpush2.msra.mxu0 0.0
    %1242 = vmatprep.subr.mxu0 0.0
    %1243 = vmatpush2.msra.mxu0 0.0
    %1244 = vmatprep.subr.mxu0 0.0
    %1245 = vmatpush2.msra.mxu0 0.0
    %1246 = vmatprep.subr.mxu0 0.0
    %1247 = vmatpush2.msra.mxu0 0.0
    %1248 = vmatprep.mubr.f32.mxu0 0.0
    %1249 = vmatmul.mubr.f32.gmra.mxu0 %v1182
    %v1250 = vpop.f32.mrf.mxu0
    %v1251 = vadd.f32 0.0, %v1250
    %v1252 = vpop.f32.mrf.mxu0
    %1253 = vdwg.mxu0
    %v1255 = vrot.slane %v1251, 1
    %v1256 = vrot.slane %v1251, 2
    %v1259 = vadd.f32 %v153, %v1255
    %v1260 = vadd.f32 %v158, %v1256
    %v1261 = vmul.f32 %v1259, 0.5
    %v1262 = vmul.f32 %v1260, 0.5
    %v1263 = vtanh.pop %v1261
    %v1264 = vtanh.pop %v1262
    %v1265 = vadd.f32 %v1263, 1.0
    %v1266 = vadd.f32 %v1264, 1.0
    %v1267 = vmul.f32 %v1265, 0.5
    %v1268 = vmul.f32 %v1266, 0.5
    %v1269 = vtanh.pop %v1259
    %v1270 = vtanh.pop %v1260
    %v1273 = vrot.slane %v1152, 7
    %v1274 = vrot.slane %v1153, 7
    %v1277 = vmul.f32 %v1267, %v1273
    %v1278 = vmul.f32 %v1268, %v1274
    %1281 = vrot.lane.b32.xlu0 %v1269, 64
    %v1282 = vpop.permute.xlu0 %1281
    %1283 = vrot.lane.b32.xlu0 %v1270, 64
    %v1284 = vpop.permute.xlu0 %1283
    %v1287 = vmul.f32 %v1267, %v1282
    %v1288 = vmul.f32 %v1268, %v1284
    %1291 = vrot.lane.b32.xlu0 %v1287, 32
    %v1292 = vpop.permute.xlu0 %1291
    %1293 = vrot.lane.b32.xlu0 %v1288, 32
    %v1294 = vpop.permute.xlu0 %1293
    %v1297 = vadd.f32 %v1277, %v1292
    %v1298 = vadd.f32 %v1278, %v1294
    %v1299 = vtanh.pop %v1297
    %v1300 = vtanh.pop %v1298
    %1303 = vrot.lane.b32.xlu0 %v1299, 64
    %v1304 = vpop.permute.xlu0 %1303
    %1305 = vrot.lane.b32.xlu0 %v1300, 64
    %v1306 = vpop.permute.xlu0 %1305
    %v1309 = vmul.f32 %v1267, %v1304
    %v1310 = vmul.f32 %v1268, %v1306
    %1313 = vrot.lane.b32.xlu0 %v1309, 32
    %v1314 = vpop.permute.xlu0 %1313
    %1315 = vrot.lane.b32.xlu0 %v1310, 32
    %v1316 = vpop.permute.xlu0 %1315
    %vm1319 = vcmask 261127
    %1320 = vst.msk [vmem:[#allocation10] sm:$0x80] %vm1319, %v1314
    %1321 = vst.msk [vmem:[#allocation10 + $0x8] sm:$0x80] %vm1319, %v1316
    %v1322 = vrot.slane %v1310, 7
    %1323 = vrot.lane.b32.xlu0 %v1322, 32
    %v1324 = vpop.permute.xlu0 %1323
    %1326 = vst.msk [vmem:[#allocation2 - $0x7] sm:$0x80] %vm1319, %v1314
    %1327 = vst.msk [vmem:[#allocation2 + $0x1] sm:$0x1] %vm306, %v1324
    %v1330 = vrot.slane %v1298, 7
    %1331 = vrot.lane.b32.xlu0 %v1297, 96
    %v1332 = vpop.permute.xlu0 %1331
    %1333 = vrot.lane.b32.xlu0 %v1330, 96
    %v1334 = vpop.permute.xlu0 %1333
    %1337 = vst.msk [vmem:[#allocation3 - $0x7] sm:$0x80] %vm1319, %v1332
    %1338 = vst.msk [vmem:[#allocation3 + $0x1] sm:$0x1] %vm306, %v1334
    // Predicated region
    $region34: #{tpu_custom_call.1} parent=1 // pred_check
      _
    $region35: #{tpu_custom_call.1} parent=1 // pred_check_branch
      %1340 = sbr.rel (0) target = $region37
    $region36: #{tpu_custom_call.1} parent=1 // pred_region
      %s1342 = ssub.s32 256, 256
      %1343 = vsyncadd [#allocation6], %s1342
      %s1344 = sshll.u32 [#allocation10], 4
      %s1345 = int_to_ptr.vmem [resolvable:$true] %s1344
      %1350 = dma.vmem_to_hbm [thread:$0]  %s1345, 256, %s4, [#allocation6], 128, 128, 8
    $region37: #{tpu_custom_call.1} parent=1 // pred_fallthru
      _
    // Predicated region
    $region38: #{tpu_custom_call.1} parent=1 // pred_check
      _
    $region39: #{tpu_custom_call.1} parent=1 // pred_check_branch
      %1352 = sbr.rel (0) target = $region41
    $region40: #{tpu_custom_call.1} parent=1 // pred_region
      %1353 = dma.done [#allocation6], 256
    $region41: #{tpu_custom_call.1} parent=1 // pred_fallthru
      _
    %1354 = vsyncpa [#allocation5], 1
    %1355 = vsyncpa [#allocation8], 1
    %1356 = vsyncpa [#allocation6], 1

</llo_original>
